<compile_context>
chip_gen: v7x
topology: tpu7x:2x2x1
jax: 0.10.0
libtpu: 0.0.40
codegen_flags: <defaults>
</compile_context>

<pallas_src>
import functools

import jax
import jax.numpy as jnp
from jax.experimental import pallas as pl
from jax.experimental.pallas import tpu as pltpu


# Padded layer widths (all multiples of 128).
_HIDDEN = (512, 512, 384, 256, 128)   # fc1..fc5 outputs (500,500,300,200,128 padded)
_HEAD = 128                           # fused [V | A | zero-pad] head width
_BIAS_ROWS, _BIAS_COLS = 8, 512       # bias slab shape
_TILE_CAP = 512                       # max batch tile


def _round_up(x, m):
    return ((x + m - 1) // m) * m


def _cdiv(a, b):
    return -(-a // b)


def _default_act_bf16():
    """bf16 inter-layer activations only where the VPU is bf16-native."""
    try:
        kind = jax.devices()[0].device_kind.lower()
    except Exception:
        return False
    return ("v6" in kind) or ("v7" in kind) or ("7x" in kind) or ("trillium" in kind)


def _choose_tiling(batch):
    """Pick (tile_b, padded_batch).

    B <= 8: single step.  Otherwise split into >= 2 steps (v7x dual-TC) with
    tile_b <= _TILE_CAP chosen so the batch pad stays small (< 8 rows per tile).
    """
    if batch <= 8:
        return 8, 8
    num_tiles = max(2, _cdiv(batch, _TILE_CAP))
    tile_b = _round_up(_cdiv(batch, num_tiles), 8)
    return tile_b, tile_b * num_tiles


# ----------------------------------------------------------------------------
# Kernel: 5 ReLU-linear layers + fused V/A head, all operands VMEM-resident.
# ----------------------------------------------------------------------------
def _dueling_kernel(x_ref,
                    w1_ref, w2_ref, w3_ref, w4_ref, w5_ref, wh_ref,
                    b_ref,          # (8, 512) f32 bias slab, row i = bias of layer i
                    out_ref,        # (TILE_B, 128) lane-dense output slab
                    *, act_bf16):
    act_dtype = jnp.bfloat16 if act_bf16 else jnp.float32

    def hidden(h, w_ref, row):
        n = w_ref.shape[1]
        # bf16 x bf16 -> f32 on the MXU.
        y = jnp.dot(h.astype(jnp.bfloat16), w_ref[...],
                    preferred_element_type=jnp.float32)
        # Bias add + ReLU in the activation dtype (bf16 on v6e/v7x, f32 on v5e).
        b = b_ref[pl.ds(row, 1), pl.ds(0, n)].astype(act_dtype)
        y = y.astype(act_dtype) + b
        return jnp.maximum(y, 0)

    h = x_ref[...]                       # (TILE_B, IN) f32
    h = hidden(h, w1_ref, 0)
    h = hidden(h, w2_ref, 1)
    h = hidden(h, w3_ref, 2)
    h = hidden(h, w4_ref, 3)
    h = hidden(h, w5_ref, 4)
    # Fused head [V | A | 0...]: no ReLU, f32 output.
    y = jnp.dot(h.astype(jnp.bfloat16), wh_ref[...],
                preferred_element_type=jnp.float32)
    out_ref[...] = y + b_ref[pl.ds(5, 1), pl.ds(0, _HEAD)]


# ----------------------------------------------------------------------------
# Host-side parameter packing: pad to lane-friendly shapes, cast weights to
# bf16, fuse the V/A heads, and pack all biases into a single slab.
# ----------------------------------------------------------------------------
def pack_params(params, input_dims, n_actions):
    """params: 7 (w, b) pairs, w stored (in_features, out_features) f32."""
    assert n_actions <= _HEAD - 1, "fused head supports n_actions <= 127"
    in_pad = _round_up(input_dims, 8)    # sublane-only pad; no 128 lane pad for x
    dims = [(in_pad, _HIDDEN[0]),
            (_HIDDEN[0], _HIDDEN[1]),
            (_HIDDEN[1], _HIDDEN[2]),
            (_HIDDEN[2], _HIDDEN[3]),
            (_HIDDEN[3], _HIDDEN[4])]

    bias_slab = jnp.zeros((_BIAS_ROWS, _BIAS_COLS), jnp.float32)
    packed_ws = []
    for i, (kin, kout) in enumerate(dims):
        w, b = params[i]
        wp = jnp.zeros((kin, kout), jnp.float32).at[:w.shape[0], :w.shape[1]].set(w)
        packed_ws.append(wp.astype(jnp.bfloat16))
        bias_slab = bias_slab.at[i, :b.shape[0]].set(b)

    # Fused head: column 0 = V, columns 1..1+n_actions = A, rest zero.
    wv, bv = params[5]
    wa, ba = params[6]
    wh = jnp.zeros((_HIDDEN[4], _HEAD), jnp.float32)
    wh = wh.at[:, 0:1].set(wv)
    wh = wh.at[:, 1:1 + n_actions].set(wa)
    bias_slab = bias_slab.at[5, 0:1].set(bv)
    bias_slab = bias_slab.at[5, 1:1 + n_actions].set(ba)

    return (*packed_ws, wh.astype(jnp.bfloat16), bias_slab)


# ----------------------------------------------------------------------------
# Wrapper: batch-tile the grid, slice V / A out of the output slab.
# ----------------------------------------------------------------------------
def dueling_forward(x, packed, n_actions, act_bf16=None):
    if act_bf16 is None:
        act_bf16 = _default_act_bf16()
    w1, w2, w3, w4, w5, wh, bslab = packed
    B = x.shape[0]
    in_pad = w1.shape[0]

    x = x.astype(jnp.float32)                          # state.float()
    if x.shape[1] < in_pad:                            # only if in_dims % 8 != 0
        x = jnp.pad(x, ((0, 0), (0, in_pad - x.shape[1])))

    tile_b, b_pad = _choose_tiling(B)
    if b_pad > B:
        x = jnp.pad(x, ((0, b_pad - B), (0, 0)))

    def const_spec(arr):
        # Whole-array block, constant index -> stays VMEM-resident across steps.
        return pl.BlockSpec(arr.shape, lambda i: (0, 0))

    in_specs = [
        pl.BlockSpec((tile_b, in_pad), lambda i: (i, 0)),   # x batch tile
        const_spec(w1), const_spec(w2), const_spec(w3),
        const_spec(w4), const_spec(w5), const_spec(wh),
        const_spec(bslab),
    ]
    out_specs = pl.BlockSpec((tile_b, _HEAD), lambda i: (i, 0))

    out = pl.pallas_call(
        functools.partial(_dueling_kernel, act_bf16=act_bf16),
        out_shape=jax.ShapeDtypeStruct((b_pad, _HEAD), jnp.float32),
        grid=(b_pad // tile_b,),
        in_specs=in_specs,
        out_specs=out_specs,
        compiler_params=pltpu.CompilerParams(
            dimension_semantics=("parallel",),
            vmem_limit_bytes=32 * 1024 * 1024,
        ),
    )(x, w1, w2, w3, w4, w5, wh, bslab)

    V = out[:B, 0:1]
    A = out[:B, 1:1 + n_actions]
    return V, A


# ----------------------------------------------------------------------------
# Parameter init + references.
# ----------------------------------------------------------------------------
def init_params(key, input_dims, n_actions):
    """PyTorch nn.Linear default init (U[-1/sqrt(fan_in), 1/sqrt(fan_in)]).
    Weights stored as (in_features, out_features) so y = x @ W + b."""
    layer_dims = [(input_dims, 500), (500, 500), (500, 300),
                  (300, 200), (200, 128), (128, 1), (128, n_actions)]
    params = []
    for fan_in, fan_out in layer_dims:
        key, kw, kb = jax.random.split(key, 3)
        bound = 1.0 / jnp.sqrt(float(fan_in))
        w = jax.random.uniform(kw, (fan_in, fan_out), jnp.float32, -bound, bound)
        b = jax.random.uniform(kb, (fan_out,), jnp.float32, -bound, bound)
        params.append((w, b))
    return params


def reference_forward_f32(x, params):
    """Pure-f32 reference matching the PyTorch module exactly."""
    h = x.astype(jnp.float32)
    for w, b in params[:5]:
        h = jax.nn.relu(h @ w + b)
    v = h @ params[5][0] + params[5][1]
    a = h @ params[6][0] + params[6][1]
    return v, a


def reference_forward_packed(x, packed, n_actions, act_bf16):
    """Mirrors the kernel numerics (bf16 weights, f32 MXU accumulate, and
    bf16 or f32 bias-add/ReLU depending on act_bf16)."""
    w1, w2, w3, w4, w5, wh, bslab = packed
    in_pad = w1.shape[0]
    act_dtype = jnp.bfloat16 if act_bf16 else jnp.float32
    h = x.astype(jnp.float32)
    if h.shape[1] < in_pad:
        h = jnp.pad(h, ((0, 0), (0, in_pad - h.shape[1])))
    for i, w in enumerate((w1, w2, w3, w4, w5)):
        n = w.shape[1]
        y = jnp.dot(h.astype(jnp.bfloat16), w,
                    preferred_element_type=jnp.float32)
        y = y.astype(act_dtype) + bslab[i:i + 1, :n].astype(act_dtype)
        h = jnp.maximum(y, 0)
    out = jnp.dot(h.astype(jnp.bfloat16), wh,
                  preferred_element_type=jnp.float32) + bslab[5:6, :_HEAD]
    return out[:, 0:1], out[:, 1:1 + n_actions]


if __name__ == "__main__":
    key = jax.random.PRNGKey(0)
    key, kx = jax.random.split(key)

    B = 8            # batch
    input_dims = 32  # *input_dims of the module
    n_actions = 4

    x = jax.random.normal(kx, (B, input_dims), dtype=jnp.float32)
    params = init_params(key, input_dims, n_actions)
    packed = pack_params(params, input_dims, n_actions)
    act_bf16 = _default_act_bf16()

    V, A = dueling_forward(x, packed, n_actions, act_bf16=act_bf16)
    V = jax.block_until_ready(V)
    A = jax.block_until_ready(A)

    assert V.shape == (B, 1) and A.shape == (B, n_actions)

    # Tight check vs. a reference that mirrors the kernel's mixed-precision
    # recipe exactly (only matmul accumulation order may differ).
    V_m, A_m = reference_forward_packed(x, packed, n_actions, act_bf16)
    assert jnp.allclose(V, V_m, atol=5e-3, rtol=5e-3)
    assert jnp.allclose(A, A_m, atol=5e-3, rtol=5e-3)

    # Loose check vs. the exact f32 PyTorch-equivalent forward (bf16 weights
    # and bf16 inter-layer activations compound ~1e-2-level differences over
    # six layers).
    V_ref, A_ref = reference_forward_f32(x, params)
    assert jnp.allclose(V, V_ref, atol=1e-1, rtol=1e-1)
    assert jnp.allclose(A, A_ref, atol=1e-1, rtol=1e-1)

    # Exercise a larger, non-tile-aligned batch to cover the multi-step grid
    # path (>= 2 grid steps, ragged batch padded by < 8 rows per tile).
    key, kx2 = jax.random.split(key)
    xb = jax.random.normal(kx2, (300, input_dims), dtype=jnp.float32)
    Vb, Ab = dueling_forward(xb, packed, n_actions, act_bf16=act_bf16)
    Vb = jax.block_until_ready(Vb)
    Ab = jax.block_until_ready(Ab)
    Vb_m, Ab_m = reference_forward_packed(xb, packed, n_actions, act_bf16)
    assert Vb.shape == (300, 1) and Ab.shape == (300, n_actions)
    assert jnp.allclose(Vb, Vb_m, atol=5e-3, rtol=5e-3)
    assert jnp.allclose(Ab, Ab_m, atol=5e-3, rtol=5e-3)

    print("KERNEL_OK")
</pallas_src>

<mosaic_0001>
module attributes {stable_mosaic.version = 11 : i64} {
  func.func @_dueling_kernel(%arg0: i32, %arg1: memref<8x32xf32, #tpu.memory_space<vmem>>, %arg2: memref<32x512xbf16, #tpu.memory_space<vmem>>, %arg3: memref<512x512xbf16, #tpu.memory_space<vmem>>, %arg4: memref<512x384xbf16, #tpu.memory_space<vmem>>, %arg5: memref<384x256xbf16, #tpu.memory_space<vmem>>, %arg6: memref<256x128xbf16, #tpu.memory_space<vmem>>, %arg7: memref<128x128xbf16, #tpu.memory_space<vmem>>, %arg8: memref<8x512xf32, #tpu.memory_space<vmem>>, %arg9: memref<8x128xf32, #tpu.memory_space<vmem>>) attributes {dimension_semantics = [#tpu.dimension_semantics<parallel>], iteration_bounds = array<i64: 1>, scalar_prefetch = 0 : i64, scratch_operands = 0 : i64, tpu.core_type = #tpu.core_type<tc>, window_params = [{transform_indices = @transform_0, window_bounds = array<i64: 8, 32>}, {pipeline_mode = #tpu.pipeline_mode<synchronous>, transform_indices = @transform_1, window_bounds = array<i64: 32, 512>}, {pipeline_mode = #tpu.pipeline_mode<synchronous>, transform_indices = @transform_2, window_bounds = array<i64: 512, 512>}, {pipeline_mode = #tpu.pipeline_mode<synchronous>, transform_indices = @transform_3, window_bounds = array<i64: 512, 384>}, {pipeline_mode = #tpu.pipeline_mode<synchronous>, transform_indices = @transform_4, window_bounds = array<i64: 384, 256>}, {pipeline_mode = #tpu.pipeline_mode<synchronous>, transform_indices = @transform_5, window_bounds = array<i64: 256, 128>}, {pipeline_mode = #tpu.pipeline_mode<synchronous>, transform_indices = @transform_6, window_bounds = array<i64: 128, 128>}, {pipeline_mode = #tpu.pipeline_mode<synchronous>, transform_indices = @transform_7, window_bounds = array<i64: 8, 512>}, {transform_indices = @transform_8, window_bounds = array<i64: 8, 128>}]} {
    %c0 = arith.constant 0 : index
    %c0_0 = arith.constant 0 : index
    %0 = vector.load %arg1[%c0, %c0_0] : memref<8x32xf32, #tpu.memory_space<vmem>>, vector<8x32xf32>
    %1 = arith.truncf %0 : vector<8x32xf32> to vector<8x32xbf16>
    %c0_1 = arith.constant 0 : index
    %c0_2 = arith.constant 0 : index
    %2 = vector.load %arg2[%c0_1, %c0_2] : memref<32x512xbf16, #tpu.memory_space<vmem>>, vector<32x512xbf16>
    %cst = arith.constant dense<0.000000e+00> : vector<8x512xf32>
    %3 = tpu.matmul %1, %2, %cst {dimension_numbers = #tpu.dot_dimension_numbers<[1], [0], [0], [1], [0, 0, 1, 1], [], []>} : vector<8x32xbf16>, vector<32x512xbf16>, vector<8x512xf32> -> vector<8x512xf32>
    %c0_3 = arith.constant 0 : index
    %c0_4 = arith.constant 0 : index
    %4 = vector.load %arg8[%c0_3, %c0_4] : memref<8x512xf32, #tpu.memory_space<vmem>>, vector<1x512xf32>
    %5 = vector.broadcast %4 : vector<1x512xf32> to vector<8x512xf32>
    %6 = arith.addf %3, %5 : vector<8x512xf32>
    %cst_5 = arith.constant 0.000000e+00 : f32
    %7 = vector.broadcast %cst_5 : f32 to vector<8x512xf32>
    %8 = arith.maximumf %6, %7 : vector<8x512xf32>
    %9 = arith.truncf %8 : vector<8x512xf32> to vector<8x512xbf16>
    %c0_6 = arith.constant 0 : index
    %c0_7 = arith.constant 0 : index
    %10 = vector.load %arg3[%c0_6, %c0_7] : memref<512x512xbf16, #tpu.memory_space<vmem>>, vector<512x512xbf16>
    %cst_8 = arith.constant dense<0.000000e+00> : vector<8x512xf32>
    %11 = tpu.matmul %9, %10, %cst_8 {dimension_numbers = #tpu.dot_dimension_numbers<[1], [0], [0], [1], [0, 0, 1, 1], [], []>} : vector<8x512xbf16>, vector<512x512xbf16>, vector<8x512xf32> -> vector<8x512xf32>
    %c1 = arith.constant 1 : index
    %c0_9 = arith.constant 0 : index
    %12 = vector.load %arg8[%c1, %c0_9] : memref<8x512xf32, #tpu.memory_space<vmem>>, vector<1x512xf32>
    %13 = vector.broadcast %12 : vector<1x512xf32> to vector<8x512xf32>
    %14 = arith.addf %11, %13 : vector<8x512xf32>
    %cst_10 = arith.constant 0.000000e+00 : f32
    %15 = vector.broadcast %cst_10 : f32 to vector<8x512xf32>
    %16 = arith.maximumf %14, %15 : vector<8x512xf32>
    %17 = arith.truncf %16 : vector<8x512xf32> to vector<8x512xbf16>
    %c0_11 = arith.constant 0 : index
    %c0_12 = arith.constant 0 : index
    %18 = vector.load %arg4[%c0_11, %c0_12] : memref<512x384xbf16, #tpu.memory_space<vmem>>, vector<512x384xbf16>
    %cst_13 = arith.constant dense<0.000000e+00> : vector<8x384xf32>
    %19 = tpu.matmul %17, %18, %cst_13 {dimension_numbers = #tpu.dot_dimension_numbers<[1], [0], [0], [1], [0, 0, 1, 1], [], []>} : vector<8x512xbf16>, vector<512x384xbf16>, vector<8x384xf32> -> vector<8x384xf32>
    %c2 = arith.constant 2 : index
    %c0_14 = arith.constant 0 : index
    %20 = vector.load %arg8[%c2, %c0_14] : memref<8x512xf32, #tpu.memory_space<vmem>>, vector<1x384xf32>
    %21 = vector.broadcast %20 : vector<1x384xf32> to vector<8x384xf32>
    %22 = arith.addf %19, %21 : vector<8x384xf32>
    %cst_15 = arith.constant 0.000000e+00 : f32
    %23 = vector.broadcast %cst_15 : f32 to vector<8x384xf32>
    %24 = arith.maximumf %22, %23 : vector<8x384xf32>
    %25 = arith.truncf %24 : vector<8x384xf32> to vector<8x384xbf16>
    %c0_16 = arith.constant 0 : index
    %c0_17 = arith.constant 0 : index
    %26 = vector.load %arg5[%c0_16, %c0_17] : memref<384x256xbf16, #tpu.memory_space<vmem>>, vector<384x256xbf16>
    %cst_18 = arith.constant dense<0.000000e+00> : vector<8x256xf32>
    %27 = tpu.matmul %25, %26, %cst_18 {dimension_numbers = #tpu.dot_dimension_numbers<[1], [0], [0], [1], [0, 0, 1, 1], [], []>} : vector<8x384xbf16>, vector<384x256xbf16>, vector<8x256xf32> -> vector<8x256xf32>
    %c3 = arith.constant 3 : index
    %c0_19 = arith.constant 0 : index
    %28 = vector.load %arg8[%c3, %c0_19] : memref<8x512xf32, #tpu.memory_space<vmem>>, vector<1x256xf32>
    %29 = vector.broadcast %28 : vector<1x256xf32> to vector<8x256xf32>
    %30 = arith.addf %27, %29 : vector<8x256xf32>
    %cst_20 = arith.constant 0.000000e+00 : f32
    %31 = vector.broadcast %cst_20 : f32 to vector<8x256xf32>
    %32 = arith.maximumf %30, %31 : vector<8x256xf32>
    %33 = arith.truncf %32 : vector<8x256xf32> to vector<8x256xbf16>
    %c0_21 = arith.constant 0 : index
    %c0_22 = arith.constant 0 : index
    %34 = vector.load %arg6[%c0_21, %c0_22] : memref<256x128xbf16, #tpu.memory_space<vmem>>, vector<256x128xbf16>
    %cst_23 = arith.constant dense<0.000000e+00> : vector<8x128xf32>
    %35 = tpu.matmul %33, %34, %cst_23 {dimension_numbers = #tpu.dot_dimension_numbers<[1], [0], [0], [1], [0, 0, 1, 1], [], []>} : vector<8x256xbf16>, vector<256x128xbf16>, vector<8x128xf32> -> vector<8x128xf32>
    %c4 = arith.constant 4 : index
    %c0_24 = arith.constant 0 : index
    %36 = vector.load %arg8[%c4, %c0_24] : memref<8x512xf32, #tpu.memory_space<vmem>>, vector<1x128xf32>
    %37 = vector.broadcast %36 : vector<1x128xf32> to vector<8x128xf32>
    %38 = arith.addf %35, %37 : vector<8x128xf32>
    %cst_25 = arith.constant 0.000000e+00 : f32
    %39 = vector.broadcast %cst_25 : f32 to vector<8x128xf32>
    %40 = arith.maximumf %38, %39 : vector<8x128xf32>
    %41 = arith.truncf %40 : vector<8x128xf32> to vector<8x128xbf16>
    %c0_26 = arith.constant 0 : index
    %c0_27 = arith.constant 0 : index
    %42 = vector.load %arg7[%c0_26, %c0_27] : memref<128x128xbf16, #tpu.memory_space<vmem>>, vector<128x128xbf16>
    %cst_28 = arith.constant dense<0.000000e+00> : vector<8x128xf32>
    %43 = tpu.matmul %41, %42, %cst_28 {dimension_numbers = #tpu.dot_dimension_numbers<[1], [0], [0], [1], [0, 0, 1, 1], [], []>} : vector<8x128xbf16>, vector<128x128xbf16>, vector<8x128xf32> -> vector<8x128xf32>
    %c5 = arith.constant 5 : index
    %c0_29 = arith.constant 0 : index
    %44 = vector.load %arg8[%c5, %c0_29] : memref<8x512xf32, #tpu.memory_space<vmem>>, vector<1x128xf32>
    %45 = vector.broadcast %44 : vector<1x128xf32> to vector<8x128xf32>
    %46 = arith.addf %43, %45 : vector<8x128xf32>
    %c0_30 = arith.constant 0 : index
    %c0_31 = arith.constant 0 : index
    %47 = vector.load %arg9[%c0_30, %c0_31] : memref<8x128xf32, #tpu.memory_space<vmem>>, vector<8x128xf32>
    tpu.vector_store %arg9[%c0_30, %c0_31], %46 {strides = array<i32>} : memref<8x128xf32, #tpu.memory_space<vmem>>, vector<8x128xf32>,
    return
  }
  func.func @transform_0(%arg0: i32) -> (i32, i32) {
    %c0_i32 = arith.constant 0 : i32
    %c0_i32_0 = arith.constant 0 : i32
    return %arg0, %c0_i32 : i32, i32
  }
  func.func @transform_1(%arg0: i32) -> (i32, i32) {
    %c0_i32 = arith.constant 0 : i32
    %c0_i32_0 = arith.constant 0 : i32
    %c0_i32_1 = arith.constant 0 : i32
    return %c0_i32, %c0_i32_0 : i32, i32
  }
  func.func @transform_2(%arg0: i32) -> (i32, i32) {
    %c0_i32 = arith.constant 0 : i32
    %c0_i32_0 = arith.constant 0 : i32
    %c0_i32_1 = arith.constant 0 : i32
    return %c0_i32, %c0_i32_0 : i32, i32
  }
  func.func @transform_3(%arg0: i32) -> (i32, i32) {
    %c0_i32 = arith.constant 0 : i32
    %c0_i32_0 = arith.constant 0 : i32
    %c0_i32_1 = arith.constant 0 : i32
    return %c0_i32, %c0_i32_0 : i32, i32
  }
  func.func @transform_4(%arg0: i32) -> (i32, i32) {
    %c0_i32 = arith.constant 0 : i32
    %c0_i32_0 = arith.constant 0 : i32
    %c0_i32_1 = arith.constant 0 : i32
    return %c0_i32, %c0_i32_0 : i32, i32
  }
  func.func @transform_5(%arg0: i32) -> (i32, i32) {
    %c0_i32 = arith.constant 0 : i32
    %c0_i32_0 = arith.constant 0 : i32
    %c0_i32_1 = arith.constant 0 : i32
    return %c0_i32, %c0_i32_0 : i32, i32
  }
  func.func @transform_6(%arg0: i32) -> (i32, i32) {
    %c0_i32 = arith.constant 0 : i32
    %c0_i32_0 = arith.constant 0 : i32
    %c0_i32_1 = arith.constant 0 : i32
    return %c0_i32, %c0_i32_0 : i32, i32
  }
  func.func @transform_7(%arg0: i32) -> (i32, i32) {
    %c0_i32 = arith.constant 0 : i32
    %c0_i32_0 = arith.constant 0 : i32
    %c0_i32_1 = arith.constant 0 : i32
    return %c0_i32, %c0_i32_0 : i32, i32
  }
  func.func @transform_8(%arg0: i32) -> (i32, i32) {
    %c0_i32 = arith.constant 0 : i32
    %c0_i32_0 = arith.constant 0 : i32
    return %arg0, %c0_i32 : i32, i32
  }
}

</mosaic_0001>

<llo_original>
// kernel: tpu_custom_call.1
$region0: #{tpu_custom_call.1}
  #allocation0 [shape = 'u32[]', space=smem, size = 0x4, offset = 0x4, fixed_abs, tag = 'smem constant byte address 0x4 - core index']
  #allocation1 [shape = 'u32[144,128]{1,0:T(1,128)}', space=vmem, size = 0x12000, scoped, tag = 'internal scratch']
  %s0 = inlined_call_operand.hbm [shape: f32[8,32], index: 0, kind: input, shape index: {}]
  %s1 = inlined_call_operand.hbm [shape: bf16[32,512], index: 1, kind: input, shape index: {}]
  %s2 = inlined_call_operand.hbm [shape: bf16[512,512], index: 2, kind: input, shape index: {}]
  %s3 = inlined_call_operand.hbm [shape: bf16[512,384], index: 3, kind: input, shape index: {}]
  %s4 = inlined_call_operand.hbm [shape: bf16[384,256], index: 4, kind: input, shape index: {}]
  %s5 = inlined_call_operand.hbm [shape: bf16[256,128], index: 5, kind: input, shape index: {}]
  %s6 = inlined_call_operand.hbm [shape: bf16[128,128], index: 6, kind: input, shape index: {}]
  %s7 = inlined_call_operand.hbm [shape: f32[8,512], index: 7, kind: input, shape index: {}]
  %s8 = inlined_call_operand.hbm [shape: f32[8,128], index: 8, kind: output, shape index: {}]
  %s9 = sld [smem:[#allocation0]]
  $region74: #{tpu_custom_call.1} parent=0
    _
  %s11 = ssub.s32 1, %s9
  %s12 = scalar_select 0, %s11, %s9
  $region1: #{tpu_custom_call.1} parent=0
    #allocation2 [shape = 'u8[4096]{0}', space=vmem, size = 0x1000, scoped, tag = 'input window, operand 0, single buffered']
    #allocation3 [shape = 's32[1]{0}', space=sflag, size = 0x4, scoped, tag = 'scoped memory for tpu_custom_call.1']
    #allocation4 [shape = 's32[1]{0}', space=sflag, size = 0x4, scoped, tag = 'scoped memory for tpu_custom_call.1']
    #allocation5 [shape = 'u8[32768]{0}', space=vmem, size = 0x8000, scoped, tag = 'input window, operand 1, single buffered']
    #allocation6 [shape = 's32[1]{0}', space=sflag, size = 0x4, scoped, tag = 'scoped memory for tpu_custom_call.1']
    #allocation7 [shape = 'u8[524288]{0}', space=vmem, size = 0x80000, scoped, tag = 'input window, operand 2, single buffered']
    #allocation8 [shape = 'u8[393216]{0}', space=vmem, size = 0x60000, scoped, tag = 'input window, operand 3, single buffered']
    #allocation9 [shape = 's32[1]{0}', space=sflag, size = 0x4, scoped, tag = 'scoped memory for tpu_custom_call.1']
    #allocation10 [shape = 'u8[196608]{0}', space=vmem, size = 0x30000, scoped, tag = 'input window, operand 4, single buffered']
    #allocation11 [shape = 'u8[65536]{0}', space=vmem, size = 0x10000, scoped, tag = 'input window, operand 5, single buffered']
    #allocation12 [shape = 's32[1]{0}', space=sflag, size = 0x4, scoped, tag = 'scoped memory for tpu_custom_call.1']
    #allocation13 [shape = 'u8[32768]{0}', space=vmem, size = 0x8000, scoped, tag = 'input window, operand 6, single buffered']
    #allocation14 [shape = 'u8[16384]{0}', space=vmem, size = 0x4000, scoped, tag = 'input window, operand 7, single buffered']
    #allocation15 [shape = 's32[1]{0}', space=sflag, size = 0x4, scoped, tag = 'scoped memory for tpu_custom_call.1']
    #allocation16 [shape = 'u8[4096]{0}', space=vmem, size = 0x1000, scoped, tag = 'output window, operand 0, single buffered']
    %13 = vsyncpa [#allocation3], 0
    %14 = vsyncpa [#allocation6], 0
    %15 = vsyncpa [#allocation9], 0
    %16 = vsyncpa [#allocation12], 0
    %17 = vsyncpa [#allocation15], 0
    %18 = vsyncpa [#allocation4], 0
    // Predicated region
    $region2: #{tpu_custom_call.1} parent=1 // pred_check
      _
    $region3: #{tpu_custom_call.1} parent=1 // pred_check_branch
      %20 = sbr.rel (0) target = $region5
    $region4: #{tpu_custom_call.1} parent=1 // pred_region
      %s22 = ssub.s32 128, 128
      %23 = vsyncadd [#allocation3], %s22
      %s25 = sshll.u32 [#allocation2], 4
      %s26 = int_to_ptr.vmem [resolvable:$true] %s25
      %28 = dma.hbm_to_vmem [thread:$0]  %s0, 128, %s26, [#allocation3]
    $region5: #{tpu_custom_call.1} parent=1 // pred_fallthru
      _
    // Predicated region
    $region6: #{tpu_custom_call.1} parent=1 // pred_check
      _
    $region7: #{tpu_custom_call.1} parent=1 // pred_check_branch
      %30 = sbr.rel (0) target = $region9
    $region8: #{tpu_custom_call.1} parent=1 // pred_region
      %s32 = ssub.s32 1024, 1024
      %33 = vsyncadd [#allocation6], %s32
      %s34 = sshll.u32 [#allocation5], 4
      %s35 = int_to_ptr.vmem [resolvable:$true] %s34
      %40 = dma.hbm_to_vmem [thread:$0]  %s1, 1024, %s35, [#allocation6], 256, 256, 16
    $region9: #{tpu_custom_call.1} parent=1 // pred_fallthru
      _
    // Predicated region
    $region10: #{tpu_custom_call.1} parent=1 // pred_check
      _
    $region11: #{tpu_custom_call.1} parent=1 // pred_check_branch
      %42 = sbr.rel (0) target = $region13
    $region12: #{tpu_custom_call.1} parent=1 // pred_region
      %s44 = ssub.s32 16384, 16384
      %45 = vsyncadd [#allocation6], %s44
      %s46 = sshll.u32 [#allocation7], 4
      %s47 = int_to_ptr.vmem [resolvable:$true] %s46
      %52 = dma.hbm_to_vmem [thread:$0]  %s2, 16384, %s47, [#allocation6], 256, 256, 16
    $region13: #{tpu_custom_call.1} parent=1 // pred_fallthru
      _
    // Predicated region
    $region14: #{tpu_custom_call.1} parent=1 // pred_check
      _
    $region15: #{tpu_custom_call.1} parent=1 // pred_check_branch
      %54 = sbr.rel (0) target = $region17
    $region16: #{tpu_custom_call.1} parent=1 // pred_region
      %s56 = ssub.s32 12288, 12288
      %57 = vsyncadd [#allocation9], %s56
      %s58 = sshll.u32 [#allocation8], 4
      %s59 = int_to_ptr.vmem [resolvable:$true] %s58
      %64 = dma.hbm_to_vmem [thread:$0]  %s3, 12288, %s59, [#allocation9], 192, 192, 12
    $region17: #{tpu_custom_call.1} parent=1 // pred_fallthru
      _
    // Predicated region
    $region18: #{tpu_custom_call.1} parent=1 // pred_check
      _
    $region19: #{tpu_custom_call.1} parent=1 // pred_check_branch
      %66 = sbr.rel (0) target = $region21
    $region20: #{tpu_custom_call.1} parent=1 // pred_region
      %s68 = ssub.s32 6144, 6144
      %69 = vsyncadd [#allocation9], %s68
      %s70 = sshll.u32 [#allocation10], 4
      %s71 = int_to_ptr.vmem [resolvable:$true] %s70
      %76 = dma.hbm_to_vmem [thread:$0]  %s4, 6144, %s71, [#allocation9], 128, 128, 8
    $region21: #{tpu_custom_call.1} parent=1 // pred_fallthru
      _
    // Predicated region
    $region22: #{tpu_custom_call.1} parent=1 // pred_check
      _
    $region23: #{tpu_custom_call.1} parent=1 // pred_check_branch
      %78 = sbr.rel (0) target = $region25
    $region24: #{tpu_custom_call.1} parent=1 // pred_region
      %s80 = ssub.s32 2048, 2048
      %81 = vsyncadd [#allocation12], %s80
      %s82 = sshll.u32 [#allocation11], 4
      %s83 = int_to_ptr.vmem [resolvable:$true] %s82
      %88 = dma.hbm_to_vmem [thread:$0]  %s5, 2048, %s83, [#allocation12], 64, 64, 4
    $region25: #{tpu_custom_call.1} parent=1 // pred_fallthru
      _
    // Predicated region
    $region26: #{tpu_custom_call.1} parent=1 // pred_check
      _
    $region27: #{tpu_custom_call.1} parent=1 // pred_check_branch
      %90 = sbr.rel (0) target = $region29
    $region28: #{tpu_custom_call.1} parent=1 // pred_region
      %s92 = ssub.s32 1024, 1024
      %93 = vsyncadd [#allocation12], %s92
      %s94 = sshll.u32 [#allocation13], 4
      %s95 = int_to_ptr.vmem [resolvable:$true] %s94
      %100 = dma.hbm_to_vmem [thread:$0]  %s6, 1024, %s95, [#allocation12], 64, 64, 4
    $region29: #{tpu_custom_call.1} parent=1 // pred_fallthru
      _
    // Predicated region
    $region30: #{tpu_custom_call.1} parent=1 // pred_check
      _
    $region31: #{tpu_custom_call.1} parent=1 // pred_check_branch
      %102 = sbr.rel (0) target = $region33
    $region32: #{tpu_custom_call.1} parent=1 // pred_region
      %s104 = ssub.s32 512, 512
      %105 = vsyncadd [#allocation15], %s104
      %s107 = sshll.u32 [#allocation14], 4
      %s108 = int_to_ptr.vmem [resolvable:$true] %s107
      %110 = dma.hbm_to_vmem [thread:$0]  %s7, 512, %s108, [#allocation15]
    $region33: #{tpu_custom_call.1} parent=1 // pred_fallthru
      _
    // Predicated region
    $region34: #{tpu_custom_call.1} parent=1 // pred_check
      _
    $region35: #{tpu_custom_call.1} parent=1 // pred_check_branch
      %112 = sbr.rel (0) target = $region37
    $region36: #{tpu_custom_call.1} parent=1 // pred_region
      %113 = dma.done [#allocation3], 128
    $region37: #{tpu_custom_call.1} parent=1 // pred_fallthru
      _
    // Predicated region
    $region38: #{tpu_custom_call.1} parent=1 // pred_check
      _
    $region39: #{tpu_custom_call.1} parent=1 // pred_check_branch
      %115 = sbr.rel (0) target = $region41
    $region40: #{tpu_custom_call.1} parent=1 // pred_region
      %116 = dma.done [#allocation6], 1024
    $region41: #{tpu_custom_call.1} parent=1 // pred_fallthru
      _
    // Predicated region
    $region42: #{tpu_custom_call.1} parent=1 // pred_check
      _
    $region43: #{tpu_custom_call.1} parent=1 // pred_check_branch
      %118 = sbr.rel (0) target = $region45
    $region44: #{tpu_custom_call.1} parent=1 // pred_region
      %119 = dma.done [#allocation6], 16384
    $region45: #{tpu_custom_call.1} parent=1 // pred_fallthru
      _
    // Predicated region
    $region46: #{tpu_custom_call.1} parent=1 // pred_check
      _
    $region47: #{tpu_custom_call.1} parent=1 // pred_check_branch
      %121 = sbr.rel (0) target = $region49
    $region48: #{tpu_custom_call.1} parent=1 // pred_region
      %122 = dma.done [#allocation9], 12288
    $region49: #{tpu_custom_call.1} parent=1 // pred_fallthru
      _
    // Predicated region
    $region50: #{tpu_custom_call.1} parent=1 // pred_check
      _
    $region51: #{tpu_custom_call.1} parent=1 // pred_check_branch
      %124 = sbr.rel (0) target = $region53
    $region52: #{tpu_custom_call.1} parent=1 // pred_region
      %125 = dma.done [#allocation9], 6144
    $region53: #{tpu_custom_call.1} parent=1 // pred_fallthru
      _
    // Predicated region
    $region54: #{tpu_custom_call.1} parent=1 // pred_check
      _
    $region55: #{tpu_custom_call.1} parent=1 // pred_check_branch
      %127 = sbr.rel (0) target = $region57
    $region56: #{tpu_custom_call.1} parent=1 // pred_region
      %128 = dma.done [#allocation12], 2048
    $region57: #{tpu_custom_call.1} parent=1 // pred_fallthru
      _
    // Predicated region
    $region58: #{tpu_custom_call.1} parent=1 // pred_check
      _
    $region59: #{tpu_custom_call.1} parent=1 // pred_check_branch
      %130 = sbr.rel (0) target = $region61
    $region60: #{tpu_custom_call.1} parent=1 // pred_region
      %131 = dma.done [#allocation12], 1024
    $region61: #{tpu_custom_call.1} parent=1 // pred_fallthru
      _
    // Predicated region
    $region62: #{tpu_custom_call.1} parent=1 // pred_check
      _
    $region63: #{tpu_custom_call.1} parent=1 // pred_check_branch
      %133 = sbr.rel (0) target = $region65
    $region64: #{tpu_custom_call.1} parent=1 // pred_region
      %134 = dma.done [#allocation15], 512
    $region65: #{tpu_custom_call.1} parent=1 // pred_fallthru
      _
    %v136 = vld [vmem:[#allocation2] sm:$0xff]
    %v137 = vpack.c.bf16 %v136, %v136
    %v138 = vld [vmem:[#allocation5] sm:$0xff]
    %v139 = vld [vmem:[#allocation5 + $0x8] sm:$0xff]
    %v140 = vld [vmem:[#allocation5 + $0x10] sm:$0xff]
    %v141 = vld [vmem:[#allocation5 + $0x18] sm:$0xff]
    %v142 = vld [vmem:[#allocation5 + $0x20] sm:$0xff]
    %v143 = vld [vmem:[#allocation5 + $0x28] sm:$0xff]
    %v144 = vld [vmem:[#allocation5 + $0x30] sm:$0xff]
    %v145 = vld [vmem:[#allocation5 + $0x38] sm:$0xff]
    %v146 = vld [vmem:[#allocation14] ss:$8 sm:$0xf]
    %v148 = vlaneseq
    %v149 = vshrl.u32 %v148, 7
    %v150 = vsub.s32 0, %v149
    %v151 = vrot.slane %v146, %v150
    %v152 = vlaneseq
    %v153 = vshrl.u32 %v152, 7
    %v154 = vsub.s32 1, %v153
    %v155 = vrot.slane %v146, %v154
    %v156 = vlaneseq
    %v157 = vshrl.u32 %v156, 7
    %v158 = vsub.s32 2, %v157
    %v159 = vrot.slane %v146, %v158
    %v160 = vlaneseq
    %v161 = vshrl.u32 %v160, 7
    %v162 = vsub.s32 3, %v161
    %v163 = vrot.slane %v146, %v162
    %v176 = vunpack.c.l.b16 %v138
    %v177 = vunpack.c.h.b16 %v138
    %v178 = vunpack.c.l.b16 %v139
    %v179 = vunpack.c.h.b16 %v139
    %v180 = vunpack.c.l.b16 %v140
    %v181 = vunpack.c.h.b16 %v140
    %v182 = vunpack.c.l.b16 %v141
    %v183 = vunpack.c.h.b16 %v141
    %v184 = vunpack.c.l.b16 %v142
    %v185 = vunpack.c.h.b16 %v142
    %v186 = vunpack.c.l.b16 %v143
    %v187 = vunpack.c.h.b16 %v143
    %v188 = vunpack.c.l.b16 %v144
    %v189 = vunpack.c.h.b16 %v144
    %v190 = vunpack.c.l.b16 %v145
    %v191 = vunpack.c.h.b16 %v145
    %v192 = vpack.c.b16 %v180, %v176
    %v193 = vpack.c.b16 %v181, %v177
    %v194 = vpack.c.b16 %v182, %v178
    %v195 = vpack.c.b16 %v183, %v179
    %v196 = vpack.c.b16 %v188, %v184
    %v197 = vpack.c.b16 %v189, %v185
    %v198 = vpack.c.b16 %v190, %v186
    %v199 = vpack.c.b16 %v191, %v187
    %vm208 = vcmask 261120
    %v210 = vsel %vm208, %v137, 0
    %212 = vmatprep.subr.bf16.mxu0 %v193
    %213 = vmatpush1.bf16.msra.mxu0 %v192
    %214 = vmatprep.subr.bf16.mxu0 %v197
    %215 = vmatpush1.bf16.msra.mxu0 %v196
    %216 = vmatprep.subr.bf16.mxu0 0
    %217 = vmatpush1.bf16.msra.mxu0 0
    %218 = vmatprep.subr.bf16.mxu0 0
    %219 = vmatpush1.bf16.msra.mxu0 0
    %220 = vmatprep.subr.bf16.mxu0 0
    %221 = vmatpush1.bf16.msra.mxu0 0
    %222 = vmatprep.subr.bf16.mxu0 0
    %223 = vmatpush1.bf16.msra.mxu0 0
    %224 = vmatprep.subr.bf16.mxu0 0
    %225 = vmatpush1.bf16.msra.mxu0 0
    %226 = vmatprep.subr.bf16.mxu0 0
    %227 = vmatpush1.bf16.msra.mxu0 0
    %228 = vmatprep.subr.bf16.mxu0 0
    %229 = vmatpush1.bf16.msra.mxu0 0
    %230 = vmatprep.subr.bf16.mxu0 0
    %231 = vmatpush1.bf16.msra.mxu0 0
    %232 = vmatprep.subr.bf16.mxu0 0
    %233 = vmatpush1.bf16.msra.mxu0 0
    %234 = vmatprep.subr.bf16.mxu0 0
    %235 = vmatpush1.bf16.msra.mxu0 0
    %236 = vmatprep.subr.bf16.mxu0 0
    %237 = vmatpush1.bf16.msra.mxu0 0
    %238 = vmatprep.subr.bf16.mxu0 0
    %239 = vmatpush1.bf16.msra.mxu0 0
    %240 = vmatprep.subr.bf16.mxu0 0
    %241 = vmatpush1.bf16.msra.mxu0 0
    %242 = vmatprep.subr.bf16.mxu0 0
    %243 = vmatpush1.bf16.msra.mxu0 0
    %244 = vmatprep.mubr.bf16.mxu0 0
    %245 = vmatmul.mubr.bf16.gmra.mrb[0].mxu0 %v210
    %v246 = vpop.f32.mrb[0].mxu0
    %v247 = vadd.f32 %v151, %v246
    %v248 = vpop.f32.mrb[0].mxu0
    %v249 = vadd.f32 %v155, %v248
    %v250 = vpop.f32.mrb[0].mxu0
    %v251 = vpop.f32.mrb[0].mxu0
    %252 = vdwg.mxu0
    %253 = vmatprep.subr.bf16.mxu0 %v195
    %254 = vmatpush1.bf16.msra.mxu0 %v194
    %255 = vmatprep.subr.bf16.mxu0 %v199
    %256 = vmatpush1.bf16.msra.mxu0 %v198
    %257 = vmatprep.subr.bf16.mxu0 0
    %258 = vmatpush1.bf16.msra.mxu0 0
    %259 = vmatprep.subr.bf16.mxu0 0
    %260 = vmatpush1.bf16.msra.mxu0 0
    %261 = vmatprep.subr.bf16.mxu0 0
    %262 = vmatpush1.bf16.msra.mxu0 0
    %263 = vmatprep.subr.bf16.mxu0 0
    %264 = vmatpush1.bf16.msra.mxu0 0
    %265 = vmatprep.subr.bf16.mxu0 0
    %266 = vmatpush1.bf16.msra.mxu0 0
    %267 = vmatprep.subr.bf16.mxu0 0
    %268 = vmatpush1.bf16.msra.mxu0 0
    %269 = vmatprep.subr.bf16.mxu0 0
    %270 = vmatpush1.bf16.msra.mxu0 0
    %271 = vmatprep.subr.bf16.mxu0 0
    %272 = vmatpush1.bf16.msra.mxu0 0
    %273 = vmatprep.subr.bf16.mxu0 0
    %274 = vmatpush1.bf16.msra.mxu0 0
    %275 = vmatprep.subr.bf16.mxu0 0
    %276 = vmatpush1.bf16.msra.mxu0 0
    %277 = vmatprep.subr.bf16.mxu0 0
    %278 = vmatpush1.bf16.msra.mxu0 0
    %279 = vmatprep.subr.bf16.mxu0 0
    %280 = vmatpush1.bf16.msra.mxu0 0
    %281 = vmatprep.subr.bf16.mxu0 0
    %282 = vmatpush1.bf16.msra.mxu0 0
    %283 = vmatprep.subr.bf16.mxu0 0
    %284 = vmatpush1.bf16.msra.mxu0 0
    %285 = vmatprep.mubr.bf16.mxu0 0
    %286 = vmatmul.mubr.bf16.gmra.mrb[0].mxu0 %v210
    %v287 = vpop.f32.mrb[0].mxu0
    %v288 = vadd.f32 %v159, %v287
    %v289 = vpop.f32.mrb[0].mxu0
    %v290 = vadd.f32 %v163, %v289
    %v291 = vpop.f32.mrb[0].mxu0
    %v292 = vpop.f32.mrb[0].mxu0
    %293 = vdwg.mxu0
    %v294 = vmax.f32 %v247, 0.0
    %v295 = vmax.f32 %v249, 0.0
    %v296 = vmax.f32 %v288, 0.0
    %v297 = vmax.f32 %v290, 0.0
    %v298 = vpack.c.bf16 %v294, %v294
    %v299 = vpack.c.bf16 %v295, %v295
    %v300 = vpack.c.bf16 %v296, %v296
    %v301 = vpack.c.bf16 %v297, %v297
    %v302 = vld [vmem:[#allocation7] sm:$0xff]
    %v303 = vld [vmem:[#allocation7 + $0x8] sm:$0xff]
    %v304 = vld [vmem:[#allocation7 + $0x10] sm:$0xff]
    %v305 = vld [vmem:[#allocation7 + $0x18] sm:$0xff]
    %v306 = vld [vmem:[#allocation7 + $0x20] sm:$0xff]
    %v307 = vld [vmem:[#allocation7 + $0x28] sm:$0xff]
    %v308 = vld [vmem:[#allocation7 + $0x30] sm:$0xff]
    %v309 = vld [vmem:[#allocation7 + $0x38] sm:$0xff]
    %v310 = vld [vmem:[#allocation7 + $0x40] sm:$0xff]
    %v311 = vld [vmem:[#allocation7 + $0x48] sm:$0xff]
    %v312 = vld [vmem:[#allocation7 + $0x50] sm:$0xff]
    %v313 = vld [vmem:[#allocation7 + $0x58] sm:$0xff]
    %v314 = vld [vmem:[#allocation7 + $0x60] sm:$0xff]
    %v315 = vld [vmem:[#allocation7 + $0x68] sm:$0xff]
    %v316 = vld [vmem:[#allocation7 + $0x70] sm:$0xff]
    %v317 = vld [vmem:[#allocation7 + $0x78] sm:$0xff]
    %v318 = vld [vmem:[#allocation7 + $0x80] sm:$0xff]
    %v319 = vld [vmem:[#allocation7 + $0x88] sm:$0xff]
    %v320 = vld [vmem:[#allocation7 + $0x90] sm:$0xff]
    %v321 = vld [vmem:[#allocation7 + $0x98] sm:$0xff]
    %v322 = vld [vmem:[#allocation7 + $0xa0] sm:$0xff]
    %v323 = vld [vmem:[#allocation7 + $0xa8] sm:$0xff]
    %v324 = vld [vmem:[#allocation7 + $0xb0] sm:$0xff]
    %v325 = vld [vmem:[#allocation7 + $0xb8] sm:$0xff]
    %v326 = vld [vmem:[#allocation7 + $0xc0] sm:$0xff]
    %v327 = vld [vmem:[#allocation7 + $0xc8] sm:$0xff]
    %v328 = vld [vmem:[#allocation7 + $0xd0] sm:$0xff]
    %v329 = vld [vmem:[#allocation7 + $0xd8] sm:$0xff]
    %v330 = vld [vmem:[#allocation7 + $0xe0] sm:$0xff]
    %v331 = vld [vmem:[#allocation7 + $0xe8] sm:$0xff]
    %v332 = vld [vmem:[#allocation7 + $0xf0] sm:$0xff]
    %v333 = vld [vmem:[#allocation7 + $0xf8] sm:$0xff]
    %v334 = vld [vmem:[#allocation7 + $0x100] sm:$0xff]
    %v335 = vld [vmem:[#allocation7 + $0x108] sm:$0xff]
    %v336 = vld [vmem:[#allocation7 + $0x110] sm:$0xff]
    %v337 = vld [vmem:[#allocation7 + $0x118] sm:$0xff]
    %v338 = vld [vmem:[#allocation7 + $0x120] sm:$0xff]
    %v339 = vld [vmem:[#allocation7 + $0x128] sm:$0xff]
    %v340 = vld [vmem:[#allocation7 + $0x130] sm:$0xff]
    %v341 = vld [vmem:[#allocation7 + $0x138] sm:$0xff]
    %v342 = vld [vmem:[#allocation7 + $0x140] sm:$0xff]
    %v343 = vld [vmem:[#allocation7 + $0x148] sm:$0xff]
    %v344 = vld [vmem:[#allocation7 + $0x150] sm:$0xff]
    %v345 = vld [vmem:[#allocation7 + $0x158] sm:$0xff]
    %v346 = vld [vmem:[#allocation7 + $0x160] sm:$0xff]
    %v347 = vld [vmem:[#allocation7 + $0x168] sm:$0xff]
    %v348 = vld [vmem:[#allocation7 + $0x170] sm:$0xff]
    %v349 = vld [vmem:[#allocation7 + $0x178] sm:$0xff]
    %v350 = vld [vmem:[#allocation7 + $0x180] sm:$0xff]
    %v351 = vld [vmem:[#allocation7 + $0x188] sm:$0xff]
    %v352 = vld [vmem:[#allocation7 + $0x190] sm:$0xff]
    %v353 = vld [vmem:[#allocation7 + $0x198] sm:$0xff]
    %v354 = vld [vmem:[#allocation7 + $0x1a0] sm:$0xff]
    %v355 = vld [vmem:[#allocation7 + $0x1a8] sm:$0xff]
    %v356 = vld [vmem:[#allocation7 + $0x1b0] sm:$0xff]
    %v357 = vld [vmem:[#allocation7 + $0x1b8] sm:$0xff]
    %v358 = vld [vmem:[#allocation7 + $0x1c0] sm:$0xff]
    %v359 = vld [vmem:[#allocation7 + $0x1c8] sm:$0xff]
    %v360 = vld [vmem:[#allocation7 + $0x1d0] sm:$0xff]
    %v361 = vld [vmem:[#allocation7 + $0x1d8] sm:$0xff]
    %v362 = vld [vmem:[#allocation7 + $0x1e0] sm:$0xff]
    %v363 = vld [vmem:[#allocation7 + $0x1e8] sm:$0xff]
    %v364 = vld [vmem:[#allocation7 + $0x1f0] sm:$0xff]
    %v365 = vld [vmem:[#allocation7 + $0x1f8] sm:$0xff]
    %v366 = vld [vmem:[#allocation7 + $0x200] sm:$0xff]
    %v367 = vld [vmem:[#allocation7 + $0x208] sm:$0xff]
    %v368 = vld [vmem:[#allocation7 + $0x210] sm:$0xff]
    %v369 = vld [vmem:[#allocation7 + $0x218] sm:$0xff]
    %v370 = vld [vmem:[#allocation7 + $0x220] sm:$0xff]
    %v371 = vld [vmem:[#allocation7 + $0x228] sm:$0xff]
    %v372 = vld [vmem:[#allocation7 + $0x230] sm:$0xff]
    %v373 = vld [vmem:[#allocation7 + $0x238] sm:$0xff]
    %v374 = vld [vmem:[#allocation7 + $0x240] sm:$0xff]
    %v375 = vld [vmem:[#allocation7 + $0x248] sm:$0xff]
    %v376 = vld [vmem:[#allocation7 + $0x250] sm:$0xff]
    %v377 = vld [vmem:[#allocation7 + $0x258] sm:$0xff]
    %v378 = vld [vmem:[#allocation7 + $0x260] sm:$0xff]
    %v379 = vld [vmem:[#allocation7 + $0x268] sm:$0xff]
    %v380 = vld [vmem:[#allocation7 + $0x270] sm:$0xff]
    %v381 = vld [vmem:[#allocation7 + $0x278] sm:$0xff]
    %v382 = vld [vmem:[#allocation7 + $0x280] sm:$0xff]
    %v383 = vld [vmem:[#allocation7 + $0x288] sm:$0xff]
    %v384 = vld [vmem:[#allocation7 + $0x290] sm:$0xff]
    %v385 = vld [vmem:[#allocation7 + $0x298] sm:$0xff]
    %v386 = vld [vmem:[#allocation7 + $0x2a0] sm:$0xff]
    %v387 = vld [vmem:[#allocation7 + $0x2a8] sm:$0xff]
    %v388 = vld [vmem:[#allocation7 + $0x2b0] sm:$0xff]
    %v389 = vld [vmem:[#allocation7 + $0x2b8] sm:$0xff]
    %v390 = vld [vmem:[#allocation7 + $0x2c0] sm:$0xff]
    %v391 = vld [vmem:[#allocation7 + $0x2c8] sm:$0xff]
    %v392 = vld [vmem:[#allocation7 + $0x2d0] sm:$0xff]
    %v393 = vld [vmem:[#allocation7 + $0x2d8] sm:$0xff]
    %v394 = vld [vmem:[#allocation7 + $0x2e0] sm:$0xff]
    %v395 = vld [vmem:[#allocation7 + $0x2e8] sm:$0xff]
    %v396 = vld [vmem:[#allocation7 + $0x2f0] sm:$0xff]
    %v397 = vld [vmem:[#allocation7 + $0x2f8] sm:$0xff]
    %v398 = vld [vmem:[#allocation7 + $0x300] sm:$0xff]
    %v399 = vld [vmem:[#allocation7 + $0x308] sm:$0xff]
    %v400 = vld [vmem:[#allocation7 + $0x310] sm:$0xff]
    %v401 = vld [vmem:[#allocation7 + $0x318] sm:$0xff]
    %v402 = vld [vmem:[#allocation7 + $0x320] sm:$0xff]
    %v403 = vld [vmem:[#allocation7 + $0x328] sm:$0xff]
    %v404 = vld [vmem:[#allocation7 + $0x330] sm:$0xff]
    %v405 = vld [vmem:[#allocation7 + $0x338] sm:$0xff]
    %v406 = vld [vmem:[#allocation7 + $0x340] sm:$0xff]
    %v407 = vld [vmem:[#allocation7 + $0x348] sm:$0xff]
    %v408 = vld [vmem:[#allocation7 + $0x350] sm:$0xff]
    %v409 = vld [vmem:[#allocation7 + $0x358] sm:$0xff]
    %v410 = vld [vmem:[#allocation7 + $0x360] sm:$0xff]
    %v411 = vld [vmem:[#allocation7 + $0x368] sm:$0xff]
    %v412 = vld [vmem:[#allocation7 + $0x370] sm:$0xff]
    %v413 = vld [vmem:[#allocation7 + $0x378] sm:$0xff]
    %v414 = vld [vmem:[#allocation7 + $0x380] sm:$0xff]
    %v415 = vld [vmem:[#allocation7 + $0x388] sm:$0xff]
    %v416 = vld [vmem:[#allocation7 + $0x390] sm:$0xff]
    %v417 = vld [vmem:[#allocation7 + $0x398] sm:$0xff]
    %v418 = vld [vmem:[#allocation7 + $0x3a0] sm:$0xff]
    %v419 = vld [vmem:[#allocation7 + $0x3a8] sm:$0xff]
    %v420 = vld [vmem:[#allocation7 + $0x3b0] sm:$0xff]
    %v421 = vld [vmem:[#allocation7 + $0x3b8] sm:$0xff]
    %v422 = vld [vmem:[#allocation7 + $0x3c0] sm:$0xff]
    %v423 = vld [vmem:[#allocation7 + $0x3c8] sm:$0xff]
    %v424 = vld [vmem:[#allocation7 + $0x3d0] sm:$0xff]
    %v425 = vld [vmem:[#allocation7 + $0x3d8] sm:$0xff]
    %v426 = vld [vmem:[#allocation7 + $0x3e0] sm:$0xff]
    %v427 = vld [vmem:[#allocation7 + $0x3e8] sm:$0xff]
    %v428 = vld [vmem:[#allocation7 + $0x3f0] sm:$0xff]
    %v429 = vld [vmem:[#allocation7 + $0x3f8] sm:$0xff]
    %s430 = scalar_lea.vmem [#allocation14], 1
    %v431 = vld [vmem:[%s430] ss:$8 sm:$0xf]
    %v433 = vlaneseq
    %v434 = vshrl.u32 %v433, 7
    %v435 = vsub.s32 0, %v434
    %v436 = vrot.slane %v431, %v435
    %v437 = vlaneseq
    %v438 = vshrl.u32 %v437, 7
    %v439 = vsub.s32 1, %v438
    %v440 = vrot.slane %v431, %v439
    %v441 = vlaneseq
    %v442 = vshrl.u32 %v441, 7
    %v443 = vsub.s32 2, %v442
    %v444 = vrot.slane %v431, %v443
    %v445 = vlaneseq
    %v446 = vshrl.u32 %v445, 7
    %v447 = vsub.s32 3, %v446
    %v448 = vrot.slane %v431, %v447
    %v581 = vunpack.c.l.b16 %v302
    %v582 = vunpack.c.h.b16 %v302
    %v583 = vunpack.c.l.b16 %v303
    %v584 = vunpack.c.h.b16 %v303
    %v585 = vunpack.c.l.b16 %v304
    %v586 = vunpack.c.h.b16 %v304
    %v587 = vunpack.c.l.b16 %v305
    %v588 = vunpack.c.h.b16 %v305
    %v589 = vunpack.c.l.b16 %v306
    %v590 = vunpack.c.h.b16 %v306
    %v591 = vunpack.c.l.b16 %v307
    %v592 = vunpack.c.h.b16 %v307
    %v593 = vunpack.c.l.b16 %v308
    %v594 = vunpack.c.h.b16 %v308
    %v595 = vunpack.c.l.b16 %v309
    %v596 = vunpack.c.h.b16 %v309
    %v597 = vunpack.c.l.b16 %v310
    %v598 = vunpack.c.h.b16 %v310
    %v599 = vunpack.c.l.b16 %v311
    %v600 = vunpack.c.h.b16 %v311
    %v601 = vunpack.c.l.b16 %v312
    %v602 = vunpack.c.h.b16 %v312
    %v603 = vunpack.c.l.b16 %v313
    %v604 = vunpack.c.h.b16 %v313
    %v605 = vunpack.c.l.b16 %v314
    %v606 = vunpack.c.h.b16 %v314
    %v607 = vunpack.c.l.b16 %v315
    %v608 = vunpack.c.h.b16 %v315
    %v609 = vunpack.c.l.b16 %v316
    %v610 = vunpack.c.h.b16 %v316
    %v611 = vunpack.c.l.b16 %v317
    %v612 = vunpack.c.h.b16 %v317
    %v613 = vunpack.c.l.b16 %v318
    %v614 = vunpack.c.h.b16 %v318
    %v615 = vunpack.c.l.b16 %v319
    %v616 = vunpack.c.h.b16 %v319
    %v617 = vunpack.c.l.b16 %v320
    %v618 = vunpack.c.h.b16 %v320
    %v619 = vunpack.c.l.b16 %v321
    %v620 = vunpack.c.h.b16 %v321
    %v621 = vunpack.c.l.b16 %v322
    %v622 = vunpack.c.h.b16 %v322
    %v623 = vunpack.c.l.b16 %v323
    %v624 = vunpack.c.h.b16 %v323
    %v625 = vunpack.c.l.b16 %v324
    %v626 = vunpack.c.h.b16 %v324
    %v627 = vunpack.c.l.b16 %v325
    %v628 = vunpack.c.h.b16 %v325
    %v629 = vunpack.c.l.b16 %v326
    %v630 = vunpack.c.h.b16 %v326
    %v631 = vunpack.c.l.b16 %v327
    %v632 = vunpack.c.h.b16 %v327
    %v633 = vunpack.c.l.b16 %v328
    %v634 = vunpack.c.h.b16 %v328
    %v635 = vunpack.c.l.b16 %v329
    %v636 = vunpack.c.h.b16 %v329
    %v637 = vunpack.c.l.b16 %v330
    %v638 = vunpack.c.h.b16 %v330
    %v639 = vunpack.c.l.b16 %v331
    %v640 = vunpack.c.h.b16 %v331
    %v641 = vunpack.c.l.b16 %v332
    %v642 = vunpack.c.h.b16 %v332
    %v643 = vunpack.c.l.b16 %v333
    %v644 = vunpack.c.h.b16 %v333
    %v645 = vunpack.c.l.b16 %v334
    %v646 = vunpack.c.h.b16 %v334
    %v647 = vunpack.c.l.b16 %v335
    %v648 = vunpack.c.h.b16 %v335
    %v649 = vunpack.c.l.b16 %v336
    %v650 = vunpack.c.h.b16 %v336
    %v651 = vunpack.c.l.b16 %v337
    %v652 = vunpack.c.h.b16 %v337
    %v653 = vunpack.c.l.b16 %v338
    %v654 = vunpack.c.h.b16 %v338
    %v655 = vunpack.c.l.b16 %v339
    %v656 = vunpack.c.h.b16 %v339
    %v657 = vunpack.c.l.b16 %v340
    %v658 = vunpack.c.h.b16 %v340
    %v659 = vunpack.c.l.b16 %v341
    %v660 = vunpack.c.h.b16 %v341
    %v661 = vunpack.c.l.b16 %v342
    %v662 = vunpack.c.h.b16 %v342
    %v663 = vunpack.c.l.b16 %v343
    %v664 = vunpack.c.h.b16 %v343
    %v665 = vunpack.c.l.b16 %v344
    %v666 = vunpack.c.h.b16 %v344
    %v667 = vunpack.c.l.b16 %v345
    %v668 = vunpack.c.h.b16 %v345
    %v669 = vunpack.c.l.b16 %v346
    %v670 = vunpack.c.h.b16 %v346
    %v671 = vunpack.c.l.b16 %v347
    %v672 = vunpack.c.h.b16 %v347
    %v673 = vunpack.c.l.b16 %v348
    %v674 = vunpack.c.h.b16 %v348
    %v675 = vunpack.c.l.b16 %v349
    %v676 = vunpack.c.h.b16 %v349
    %v677 = vunpack.c.l.b16 %v350
    %v678 = vunpack.c.h.b16 %v350
    %v679 = vunpack.c.l.b16 %v351
    %v680 = vunpack.c.h.b16 %v351
    %v681 = vunpack.c.l.b16 %v352
    %v682 = vunpack.c.h.b16 %v352
    %v683 = vunpack.c.l.b16 %v353
    %v684 = vunpack.c.h.b16 %v353
    %v685 = vunpack.c.l.b16 %v354
    %v686 = vunpack.c.h.b16 %v354
    %v687 = vunpack.c.l.b16 %v355
    %v688 = vunpack.c.h.b16 %v355
    %v689 = vunpack.c.l.b16 %v356
    %v690 = vunpack.c.h.b16 %v356
    %v691 = vunpack.c.l.b16 %v357
    %v692 = vunpack.c.h.b16 %v357
    %v693 = vunpack.c.l.b16 %v358
    %v694 = vunpack.c.h.b16 %v358
    %v695 = vunpack.c.l.b16 %v359
    %v696 = vunpack.c.h.b16 %v359
    %v697 = vunpack.c.l.b16 %v360
    %v698 = vunpack.c.h.b16 %v360
    %v699 = vunpack.c.l.b16 %v361
    %v700 = vunpack.c.h.b16 %v361
    %v701 = vunpack.c.l.b16 %v362
    %v702 = vunpack.c.h.b16 %v362
    %v703 = vunpack.c.l.b16 %v363
    %v704 = vunpack.c.h.b16 %v363
    %v705 = vunpack.c.l.b16 %v364
    %v706 = vunpack.c.h.b16 %v364
    %v707 = vunpack.c.l.b16 %v365
    %v708 = vunpack.c.h.b16 %v365
    %v709 = vunpack.c.l.b16 %v366
    %v710 = vunpack.c.h.b16 %v366
    %v711 = vunpack.c.l.b16 %v367
    %v712 = vunpack.c.h.b16 %v367
    %v713 = vunpack.c.l.b16 %v368
    %v714 = vunpack.c.h.b16 %v368
    %v715 = vunpack.c.l.b16 %v369
    %v716 = vunpack.c.h.b16 %v369
    %v717 = vunpack.c.l.b16 %v370
    %v718 = vunpack.c.h.b16 %v370
    %v719 = vunpack.c.l.b16 %v371
    %v720 = vunpack.c.h.b16 %v371
    %v721 = vunpack.c.l.b16 %v372
    %v722 = vunpack.c.h.b16 %v372
    %v723 = vunpack.c.l.b16 %v373
    %v724 = vunpack.c.h.b16 %v373
    %v725 = vunpack.c.l.b16 %v374
    %v726 = vunpack.c.h.b16 %v374
    %v727 = vunpack.c.l.b16 %v375
    %v728 = vunpack.c.h.b16 %v375
    %v729 = vunpack.c.l.b16 %v376
    %v730 = vunpack.c.h.b16 %v376
    %v731 = vunpack.c.l.b16 %v377
    %v732 = vunpack.c.h.b16 %v377
    %v733 = vunpack.c.l.b16 %v378
    %v734 = vunpack.c.h.b16 %v378
    %v735 = vunpack.c.l.b16 %v379
    %v736 = vunpack.c.h.b16 %v379
    %v737 = vunpack.c.l.b16 %v380
    %v738 = vunpack.c.h.b16 %v380
    %v739 = vunpack.c.l.b16 %v381
    %v740 = vunpack.c.h.b16 %v381
    %v741 = vunpack.c.l.b16 %v382
    %v742 = vunpack.c.h.b16 %v382
    %v743 = vunpack.c.l.b16 %v383
    %v744 = vunpack.c.h.b16 %v383
    %v745 = vunpack.c.l.b16 %v384
    %v746 = vunpack.c.h.b16 %v384
    %v747 = vunpack.c.l.b16 %v385
    %v748 = vunpack.c.h.b16 %v385
    %v749 = vunpack.c.l.b16 %v386
    %v750 = vunpack.c.h.b16 %v386
    %v751 = vunpack.c.l.b16 %v387
    %v752 = vunpack.c.h.b16 %v387
    %v753 = vunpack.c.l.b16 %v388
    %v754 = vunpack.c.h.b16 %v388
    %v755 = vunpack.c.l.b16 %v389
    %v756 = vunpack.c.h.b16 %v389
    %v757 = vunpack.c.l.b16 %v390
    %v758 = vunpack.c.h.b16 %v390
    %v759 = vunpack.c.l.b16 %v391
    %v760 = vunpack.c.h.b16 %v391
    %v761 = vunpack.c.l.b16 %v392
    %v762 = vunpack.c.h.b16 %v392
    %v763 = vunpack.c.l.b16 %v393
    %v764 = vunpack.c.h.b16 %v393
    %v765 = vunpack.c.l.b16 %v394
    %v766 = vunpack.c.h.b16 %v394
    %v767 = vunpack.c.l.b16 %v395
    %v768 = vunpack.c.h.b16 %v395
    %v769 = vunpack.c.l.b16 %v396
    %v770 = vunpack.c.h.b16 %v396
    %v771 = vunpack.c.l.b16 %v397
    %v772 = vunpack.c.h.b16 %v397
    %v773 = vunpack.c.l.b16 %v398
    %v774 = vunpack.c.h.b16 %v398
    %v775 = vunpack.c.l.b16 %v399
    %v776 = vunpack.c.h.b16 %v399
    %v777 = vunpack.c.l.b16 %v400
    %v778 = vunpack.c.h.b16 %v400
    %v779 = vunpack.c.l.b16 %v401
    %v780 = vunpack.c.h.b16 %v401
    %v781 = vunpack.c.l.b16 %v402
    %v782 = vunpack.c.h.b16 %v402
    %v783 = vunpack.c.l.b16 %v403
    %v784 = vunpack.c.h.b16 %v403
    %v785 = vunpack.c.l.b16 %v404
    %v786 = vunpack.c.h.b16 %v404
    %v787 = vunpack.c.l.b16 %v405
    %v788 = vunpack.c.h.b16 %v405
    %v789 = vunpack.c.l.b16 %v406
    %v790 = vunpack.c.h.b16 %v406
    %v791 = vunpack.c.l.b16 %v407
    %v792 = vunpack.c.h.b16 %v407
    %v793 = vunpack.c.l.b16 %v408
    %v794 = vunpack.c.h.b16 %v408
    %v795 = vunpack.c.l.b16 %v409
    %v796 = vunpack.c.h.b16 %v409
    %v797 = vunpack.c.l.b16 %v410
    %v798 = vunpack.c.h.b16 %v410
    %v799 = vunpack.c.l.b16 %v411
    %v800 = vunpack.c.h.b16 %v411
    %v801 = vunpack.c.l.b16 %v412
    %v802 = vunpack.c.h.b16 %v412
    %v803 = vunpack.c.l.b16 %v413
    %v804 = vunpack.c.h.b16 %v413
    %v805 = vunpack.c.l.b16 %v414
    %v806 = vunpack.c.h.b16 %v414
    %v807 = vunpack.c.l.b16 %v415
    %v808 = vunpack.c.h.b16 %v415
    %v809 = vunpack.c.l.b16 %v416
    %v810 = vunpack.c.h.b16 %v416
    %v811 = vunpack.c.l.b16 %v417
    %v812 = vunpack.c.h.b16 %v417
    %v813 = vunpack.c.l.b16 %v418
    %v814 = vunpack.c.h.b16 %v418
    %v815 = vunpack.c.l.b16 %v419
    %v816 = vunpack.c.h.b16 %v419
    %v817 = vunpack.c.l.b16 %v420
    %v818 = vunpack.c.h.b16 %v420
    %v819 = vunpack.c.l.b16 %v421
    %v820 = vunpack.c.h.b16 %v421
    %v821 = vunpack.c.l.b16 %v422
    %v822 = vunpack.c.h.b16 %v422
    %v823 = vunpack.c.l.b16 %v423
    %v824 = vunpack.c.h.b16 %v423
    %v825 = vunpack.c.l.b16 %v424
    %v826 = vunpack.c.h.b16 %v424
    %v827 = vunpack.c.l.b16 %v425
    %v828 = vunpack.c.h.b16 %v425
    %v829 = vunpack.c.l.b16 %v426
    %v830 = vunpack.c.h.b16 %v426
    %v831 = vunpack.c.l.b16 %v427
    %v832 = vunpack.c.h.b16 %v427
    %v833 = vunpack.c.l.b16 %v428
    %v834 = vunpack.c.h.b16 %v428
    %v835 = vunpack.c.l.b16 %v429
    %v836 = vunpack.c.h.b16 %v429
    %v837 = vpack.c.b16 %v585, %v581
    %v838 = vpack.c.b16 %v586, %v582
    %v839 = vpack.c.b16 %v587, %v583
    %v840 = vpack.c.b16 %v588, %v584
    %v841 = vpack.c.b16 %v593, %v589
    %v842 = vpack.c.b16 %v594, %v590
    %v843 = vpack.c.b16 %v595, %v591
    %v844 = vpack.c.b16 %v596, %v592
    %v845 = vpack.c.b16 %v601, %v597
    %v846 = vpack.c.b16 %v602, %v598
    %v847 = vpack.c.b16 %v603, %v599
    %v848 = vpack.c.b16 %v604, %v600
    %v849 = vpack.c.b16 %v609, %v605
    %v850 = vpack.c.b16 %v610, %v606
    %v851 = vpack.c.b16 %v611, %v607
    %v852 = vpack.c.b16 %v612, %v608
    %v853 = vpack.c.b16 %v617, %v613
    %v854 = vpack.c.b16 %v618, %v614
    %v855 = vpack.c.b16 %v619, %v615
    %v856 = vpack.c.b16 %v620, %v616
    %v857 = vpack.c.b16 %v625, %v621
    %v858 = vpack.c.b16 %v626, %v622
    %v859 = vpack.c.b16 %v627, %v623
    %v860 = vpack.c.b16 %v628, %v624
    %v861 = vpack.c.b16 %v633, %v629
    %v862 = vpack.c.b16 %v634, %v630
    %v863 = vpack.c.b16 %v635, %v631
    %v864 = vpack.c.b16 %v636, %v632
    %v865 = vpack.c.b16 %v641, %v637
    %v866 = vpack.c.b16 %v642, %v638
    %v867 = vpack.c.b16 %v643, %v639
    %v868 = vpack.c.b16 %v644, %v640
    %v869 = vpack.c.b16 %v649, %v645
    %v870 = vpack.c.b16 %v650, %v646
    %v871 = vpack.c.b16 %v651, %v647
    %v872 = vpack.c.b16 %v652, %v648
    %v873 = vpack.c.b16 %v657, %v653
    %v874 = vpack.c.b16 %v658, %v654
    %v875 = vpack.c.b16 %v659, %v655
    %v876 = vpack.c.b16 %v660, %v656
    %v877 = vpack.c.b16 %v665, %v661
    %v878 = vpack.c.b16 %v666, %v662
    %v879 = vpack.c.b16 %v667, %v663
    %v880 = vpack.c.b16 %v668, %v664
    %v881 = vpack.c.b16 %v673, %v669
    %v882 = vpack.c.b16 %v674, %v670
    %v883 = vpack.c.b16 %v675, %v671
    %v884 = vpack.c.b16 %v676, %v672
    %v885 = vpack.c.b16 %v681, %v677
    %v886 = vpack.c.b16 %v682, %v678
    %v887 = vpack.c.b16 %v683, %v679
    %v888 = vpack.c.b16 %v684, %v680
    %v889 = vpack.c.b16 %v689, %v685
    %v890 = vpack.c.b16 %v690, %v686
    %v891 = vpack.c.b16 %v691, %v687
    %v892 = vpack.c.b16 %v692, %v688
    %v893 = vpack.c.b16 %v697, %v693
    %v894 = vpack.c.b16 %v698, %v694
    %v895 = vpack.c.b16 %v699, %v695
    %v896 = vpack.c.b16 %v700, %v696
    %v897 = vpack.c.b16 %v705, %v701
    %v898 = vpack.c.b16 %v706, %v702
    %v899 = vpack.c.b16 %v707, %v703
    %v900 = vpack.c.b16 %v708, %v704
    %v901 = vpack.c.b16 %v713, %v709
    %v902 = vpack.c.b16 %v714, %v710
    %v903 = vpack.c.b16 %v715, %v711
    %v904 = vpack.c.b16 %v716, %v712
    %v905 = vpack.c.b16 %v721, %v717
    %v906 = vpack.c.b16 %v722, %v718
    %v907 = vpack.c.b16 %v723, %v719
    %v908 = vpack.c.b16 %v724, %v720
    %v909 = vpack.c.b16 %v729, %v725
    %v910 = vpack.c.b16 %v730, %v726
    %v911 = vpack.c.b16 %v731, %v727
    %v912 = vpack.c.b16 %v732, %v728
    %v913 = vpack.c.b16 %v737, %v733
    %v914 = vpack.c.b16 %v738, %v734
    %v915 = vpack.c.b16 %v739, %v735
    %v916 = vpack.c.b16 %v740, %v736
    %v917 = vpack.c.b16 %v745, %v741
    %v918 = vpack.c.b16 %v746, %v742
    %v919 = vpack.c.b16 %v747, %v743
    %v920 = vpack.c.b16 %v748, %v744
    %v921 = vpack.c.b16 %v753, %v749
    %v922 = vpack.c.b16 %v754, %v750
    %v923 = vpack.c.b16 %v755, %v751
    %v924 = vpack.c.b16 %v756, %v752
    %v925 = vpack.c.b16 %v761, %v757
    %v926 = vpack.c.b16 %v762, %v758
    %v927 = vpack.c.b16 %v763, %v759
    %v928 = vpack.c.b16 %v764, %v760
    %v929 = vpack.c.b16 %v769, %v765
    %v930 = vpack.c.b16 %v770, %v766
    %v931 = vpack.c.b16 %v771, %v767
    %v932 = vpack.c.b16 %v772, %v768
    %v933 = vpack.c.b16 %v777, %v773
    %v934 = vpack.c.b16 %v778, %v774
    %v935 = vpack.c.b16 %v779, %v775
    %v936 = vpack.c.b16 %v780, %v776
    %v937 = vpack.c.b16 %v785, %v781
    %v938 = vpack.c.b16 %v786, %v782
    %v939 = vpack.c.b16 %v787, %v783
    %v940 = vpack.c.b16 %v788, %v784
    %v941 = vpack.c.b16 %v793, %v789
    %v942 = vpack.c.b16 %v794, %v790
    %v943 = vpack.c.b16 %v795, %v791
    %v944 = vpack.c.b16 %v796, %v792
    %v945 = vpack.c.b16 %v801, %v797
    %v946 = vpack.c.b16 %v802, %v798
    %v947 = vpack.c.b16 %v803, %v799
    %v948 = vpack.c.b16 %v804, %v800
    %v949 = vpack.c.b16 %v809, %v805
    %v950 = vpack.c.b16 %v810, %v806
    %v951 = vpack.c.b16 %v811, %v807
    %v952 = vpack.c.b16 %v812, %v808
    %v953 = vpack.c.b16 %v817, %v813
    %v954 = vpack.c.b16 %v818, %v814
    %v955 = vpack.c.b16 %v819, %v815
    %v956 = vpack.c.b16 %v820, %v816
    %v957 = vpack.c.b16 %v825, %v821
    %v958 = vpack.c.b16 %v826, %v822
    %v959 = vpack.c.b16 %v827, %v823
    %v960 = vpack.c.b16 %v828, %v824
    %v961 = vpack.c.b16 %v833, %v829
    %v962 = vpack.c.b16 %v834, %v830
    %v963 = vpack.c.b16 %v835, %v831
    %v964 = vpack.c.b16 %v836, %v832
    %1093 = vmatprep.subr.bf16.mxu0 %v838
    %1094 = vmatpush1.bf16.msra.mxu0 %v837
    %1095 = vmatprep.subr.bf16.mxu0 %v842
    %1096 = vmatpush1.bf16.msra.mxu0 %v841
    %1097 = vmatprep.subr.bf16.mxu0 %v846
    %1098 = vmatpush1.bf16.msra.mxu0 %v845
    %1099 = vmatprep.subr.bf16.mxu0 %v850
    %1100 = vmatpush1.bf16.msra.mxu0 %v849
    %1101 = vmatprep.subr.bf16.mxu0 %v854
    %1102 = vmatpush1.bf16.msra.mxu0 %v853
    %1103 = vmatprep.subr.bf16.mxu0 %v858
    %1104 = vmatpush1.bf16.msra.mxu0 %v857
    %1105 = vmatprep.subr.bf16.mxu0 %v862
    %1106 = vmatpush1.bf16.msra.mxu0 %v861
    %1107 = vmatprep.subr.bf16.mxu0 %v866
    %1108 = vmatpush1.bf16.msra.mxu0 %v865
    %1109 = vmatprep.subr.bf16.mxu0 %v870
    %1110 = vmatpush1.bf16.msra.mxu0 %v869
    %1111 = vmatprep.subr.bf16.mxu0 %v874
    %1112 = vmatpush1.bf16.msra.mxu0 %v873
    %1113 = vmatprep.subr.bf16.mxu0 %v878
    %1114 = vmatpush1.bf16.msra.mxu0 %v877
    %1115 = vmatprep.subr.bf16.mxu0 %v882
    %1116 = vmatpush1.bf16.msra.mxu0 %v881
    %1117 = vmatprep.subr.bf16.mxu0 %v886
    %1118 = vmatpush1.bf16.msra.mxu0 %v885
    %1119 = vmatprep.subr.bf16.mxu0 %v890
    %1120 = vmatpush1.bf16.msra.mxu0 %v889
    %1121 = vmatprep.subr.bf16.mxu0 %v894
    %1122 = vmatpush1.bf16.msra.mxu0 %v893
    %1123 = vmatprep.subr.bf16.mxu0 %v898
    %1124 = vmatpush1.bf16.msra.mxu0 %v897
    %1125 = vmatprep.mubr.bf16.mxu0 %v299
    %1126 = vmatmul.mubr.bf16.gmra.mrb[0].mxu0 %v298
    %v1127 = vpop.f32.mrb[0].mxu0
    %v1128 = vadd.f32 %v436, %v1127
    %v1129 = vpop.f32.mrb[0].mxu0
    %v1130 = vadd.f32 %v440, %v1129
    %v1131 = vpop.f32.mrb[0].mxu0
    %v1132 = vpop.f32.mrb[0].mxu0
    %1133 = vdwg.mxu0
    %1134 = vmatprep.subr.bf16.mxu0 %v902
    %1135 = vmatpush1.bf16.msra.mxu0 %v901
    %1136 = vmatprep.subr.bf16.mxu0 %v906
    %1137 = vmatpush1.bf16.msra.mxu0 %v905
    %1138 = vmatprep.subr.bf16.mxu0 %v910
    %1139 = vmatpush1.bf16.msra.mxu0 %v909
    %1140 = vmatprep.subr.bf16.mxu0 %v914
    %1141 = vmatpush1.bf16.msra.mxu0 %v913
    %1142 = vmatprep.subr.bf16.mxu0 %v918
    %1143 = vmatpush1.bf16.msra.mxu0 %v917
    %1144 = vmatprep.subr.bf16.mxu0 %v922
    %1145 = vmatpush1.bf16.msra.mxu0 %v921
    %1146 = vmatprep.subr.bf16.mxu0 %v926
    %1147 = vmatpush1.bf16.msra.mxu0 %v925
    %1148 = vmatprep.subr.bf16.mxu0 %v930
    %1149 = vmatpush1.bf16.msra.mxu0 %v929
    %1150 = vmatprep.subr.bf16.mxu0 %v934
    %1151 = vmatpush1.bf16.msra.mxu0 %v933
    %1152 = vmatprep.subr.bf16.mxu0 %v938
    %1153 = vmatpush1.bf16.msra.mxu0 %v937
    %1154 = vmatprep.subr.bf16.mxu0 %v942
    %1155 = vmatpush1.bf16.msra.mxu0 %v941
    %1156 = vmatprep.subr.bf16.mxu0 %v946
    %1157 = vmatpush1.bf16.msra.mxu0 %v945
    %1158 = vmatprep.subr.bf16.mxu0 %v950
    %1159 = vmatpush1.bf16.msra.mxu0 %v949
    %1160 = vmatprep.subr.bf16.mxu0 %v954
    %1161 = vmatpush1.bf16.msra.mxu0 %v953
    %1162 = vmatprep.subr.bf16.mxu0 %v958
    %1163 = vmatpush1.bf16.msra.mxu0 %v957
    %1164 = vmatprep.subr.bf16.mxu0 %v962
    %1165 = vmatpush1.bf16.msra.mxu0 %v961
    %1166 = vmatprep.mubr.bf16.mxu0 %v301
    %1167 = vmatmul.mubr.bf16.gmra.mrb[0].mxu0 %v300
    %v1168 = vpop.f32.mrb[0].mxu0
    %v1169 = vadd.f32 %v1128, %v1168
    %v1170 = vpop.f32.mrb[0].mxu0
    %v1171 = vadd.f32 %v1130, %v1170
    %v1172 = vpop.f32.mrb[0].mxu0
    %v1173 = vpop.f32.mrb[0].mxu0
    %1174 = vdwg.mxu0
    %1175 = vmatprep.subr.bf16.mxu0 %v840
    %1176 = vmatpush1.bf16.msra.mxu0 %v839
    %1177 = vmatprep.subr.bf16.mxu0 %v844
    %1178 = vmatpush1.bf16.msra.mxu0 %v843
    %1179 = vmatprep.subr.bf16.mxu0 %v848
    %1180 = vmatpush1.bf16.msra.mxu0 %v847
    %1181 = vmatprep.subr.bf16.mxu0 %v852
    %1182 = vmatpush1.bf16.msra.mxu0 %v851
    %1183 = vmatprep.subr.bf16.mxu0 %v856
    %1184 = vmatpush1.bf16.msra.mxu0 %v855
    %1185 = vmatprep.subr.bf16.mxu0 %v860
    %1186 = vmatpush1.bf16.msra.mxu0 %v859
    %1187 = vmatprep.subr.bf16.mxu0 %v864
    %1188 = vmatpush1.bf16.msra.mxu0 %v863
    %1189 = vmatprep.subr.bf16.mxu0 %v868
    %1190 = vmatpush1.bf16.msra.mxu0 %v867
    %1191 = vmatprep.subr.bf16.mxu0 %v872
    %1192 = vmatpush1.bf16.msra.mxu0 %v871
    %1193 = vmatprep.subr.bf16.mxu0 %v876
    %1194 = vmatpush1.bf16.msra.mxu0 %v875
    %1195 = vmatprep.subr.bf16.mxu0 %v880
    %1196 = vmatpush1.bf16.msra.mxu0 %v879
    %1197 = vmatprep.subr.bf16.mxu0 %v884
    %1198 = vmatpush1.bf16.msra.mxu0 %v883
    %1199 = vmatprep.subr.bf16.mxu0 %v888
    %1200 = vmatpush1.bf16.msra.mxu0 %v887
    %1201 = vmatprep.subr.bf16.mxu0 %v892
    %1202 = vmatpush1.bf16.msra.mxu0 %v891
    %1203 = vmatprep.subr.bf16.mxu0 %v896
    %1204 = vmatpush1.bf16.msra.mxu0 %v895
    %1205 = vmatprep.subr.bf16.mxu0 %v900
    %1206 = vmatpush1.bf16.msra.mxu0 %v899
    %1207 = vmatprep.mubr.bf16.mxu0 %v299
    %1208 = vmatmul.mubr.bf16.gmra.mrb[0].mxu0 %v298
    %v1209 = vpop.f32.mrb[0].mxu0
    %v1210 = vadd.f32 %v444, %v1209
    %v1211 = vpop.f32.mrb[0].mxu0
    %v1212 = vadd.f32 %v448, %v1211
    %v1213 = vpop.f32.mrb[0].mxu0
    %v1214 = vpop.f32.mrb[0].mxu0
    %1215 = vdwg.mxu0
    %1216 = vmatprep.subr.bf16.mxu0 %v904
    %1217 = vmatpush1.bf16.msra.mxu0 %v903
    %1218 = vmatprep.subr.bf16.mxu0 %v908
    %1219 = vmatpush1.bf16.msra.mxu0 %v907
    %1220 = vmatprep.subr.bf16.mxu0 %v912
    %1221 = vmatpush1.bf16.msra.mxu0 %v911
    %1222 = vmatprep.subr.bf16.mxu0 %v916
    %1223 = vmatpush1.bf16.msra.mxu0 %v915
    %1224 = vmatprep.subr.bf16.mxu0 %v920
    %1225 = vmatpush1.bf16.msra.mxu0 %v919
    %1226 = vmatprep.subr.bf16.mxu0 %v924
    %1227 = vmatpush1.bf16.msra.mxu0 %v923
    %1228 = vmatprep.subr.bf16.mxu0 %v928
    %1229 = vmatpush1.bf16.msra.mxu0 %v927
    %1230 = vmatprep.subr.bf16.mxu0 %v932
    %1231 = vmatpush1.bf16.msra.mxu0 %v931
    %1232 = vmatprep.subr.bf16.mxu0 %v936
    %1233 = vmatpush1.bf16.msra.mxu0 %v935
    %1234 = vmatprep.subr.bf16.mxu0 %v940
    %1235 = vmatpush1.bf16.msra.mxu0 %v939
    %1236 = vmatprep.subr.bf16.mxu0 %v944
    %1237 = vmatpush1.bf16.msra.mxu0 %v943
    %1238 = vmatprep.subr.bf16.mxu0 %v948
    %1239 = vmatpush1.bf16.msra.mxu0 %v947
    %1240 = vmatprep.subr.bf16.mxu0 %v952
    %1241 = vmatpush1.bf16.msra.mxu0 %v951
    %1242 = vmatprep.subr.bf16.mxu0 %v956
    %1243 = vmatpush1.bf16.msra.mxu0 %v955
    %1244 = vmatprep.subr.bf16.mxu0 %v960
    %1245 = vmatpush1.bf16.msra.mxu0 %v959
    %1246 = vmatprep.subr.bf16.mxu0 %v964
    %1247 = vmatpush1.bf16.msra.mxu0 %v963
    %1248 = vmatprep.mubr.bf16.mxu0 %v301
    %1249 = vmatmul.mubr.bf16.gmra.mrb[0].mxu0 %v300
    %v1250 = vpop.f32.mrb[0].mxu0
    %v1251 = vadd.f32 %v1210, %v1250
    %v1252 = vpop.f32.mrb[0].mxu0
    %v1253 = vadd.f32 %v1212, %v1252
    %v1254 = vpop.f32.mrb[0].mxu0
    %v1255 = vpop.f32.mrb[0].mxu0
    %1256 = vdwg.mxu0
    %v1257 = vmax.f32 %v1169, 0.0
    %v1258 = vmax.f32 %v1171, 0.0
    %v1259 = vmax.f32 %v1251, 0.0
    %v1260 = vmax.f32 %v1253, 0.0
    %v1261 = vpack.c.bf16 %v1257, %v1257
    %v1262 = vpack.c.bf16 %v1258, %v1258
    %v1263 = vpack.c.bf16 %v1259, %v1259
    %v1264 = vpack.c.bf16 %v1260, %v1260
    %v1265 = vld [vmem:[#allocation8] sm:$0xff]
    %v1266 = vld [vmem:[#allocation8 + $0x8] sm:$0xf]
    %v1267 = vld [vmem:[#allocation8 + $0xc] sm:$0xff]
    %v1268 = vld [vmem:[#allocation8 + $0x14] sm:$0xf]
    %v1269 = vld [vmem:[#allocation8 + $0x18] sm:$0xff]
    %v1270 = vld [vmem:[#allocation8 + $0x20] sm:$0xf]
    %v1271 = vld [vmem:[#allocation8 + $0x24] sm:$0xff]
    %v1272 = vld [vmem:[#allocation8 + $0x2c] sm:$0xf]
    %v1273 = vld [vmem:[#allocation8 + $0x30] sm:$0xff]
    %v1274 = vld [vmem:[#allocation8 + $0x38] sm:$0xf]
    %v1275 = vld [vmem:[#allocation8 + $0x3c] sm:$0xff]
    %v1276 = vld [vmem:[#allocation8 + $0x44] sm:$0xf]
    %v1277 = vld [vmem:[#allocation8 + $0x48] sm:$0xff]
    %v1278 = vld [vmem:[#allocation8 + $0x50] sm:$0xf]
    %v1279 = vld [vmem:[#allocation8 + $0x54] sm:$0xff]
    %v1280 = vld [vmem:[#allocation8 + $0x5c] sm:$0xf]
    %v1281 = vld [vmem:[#allocation8 + $0x60] sm:$0xff]
    %v1282 = vld [vmem:[#allocation8 + $0x68] sm:$0xf]
    %v1283 = vld [vmem:[#allocation8 + $0x6c] sm:$0xff]
    %v1284 = vld [vmem:[#allocation8 + $0x74] sm:$0xf]
    %v1285 = vld [vmem:[#allocation8 + $0x78] sm:$0xff]
    %v1286 = vld [vmem:[#allocation8 + $0x80] sm:$0xf]
    %v1287 = vld [vmem:[#allocation8 + $0x84] sm:$0xff]
    %v1288 = vld [vmem:[#allocation8 + $0x8c] sm:$0xf]
    %v1289 = vld [vmem:[#allocation8 + $0x90] sm:$0xff]
    %v1290 = vld [vmem:[#allocation8 + $0x98] sm:$0xf]
    %v1291 = vld [vmem:[#allocation8 + $0x9c] sm:$0xff]
    %v1292 = vld [vmem:[#allocation8 + $0xa4] sm:$0xf]
    %v1293 = vld [vmem:[#allocation8 + $0xa8] sm:$0xff]
    %v1294 = vld [vmem:[#allocation8 + $0xb0] sm:$0xf]
    %v1295 = vld [vmem:[#allocation8 + $0xb4] sm:$0xff]
    %v1296 = vld [vmem:[#allocation8 + $0xbc] sm:$0xf]
    %v1297 = vld [vmem:[#allocation8 + $0xc0] sm:$0xff]
    %v1298 = vld [vmem:[#allocation8 + $0xc8] sm:$0xf]
    %v1299 = vld [vmem:[#allocation8 + $0xcc] sm:$0xff]
    %v1300 = vld [vmem:[#allocation8 + $0xd4] sm:$0xf]
    %v1301 = vld [vmem:[#allocation8 + $0xd8] sm:$0xff]
    %v1302 = vld [vmem:[#allocation8 + $0xe0] sm:$0xf]
    %v1303 = vld [vmem:[#allocation8 + $0xe4] sm:$0xff]
    %v1304 = vld [vmem:[#allocation8 + $0xec] sm:$0xf]
    %v1305 = vld [vmem:[#allocation8 + $0xf0] sm:$0xff]
    %v1306 = vld [vmem:[#allocation8 + $0xf8] sm:$0xf]
    %v1307 = vld [vmem:[#allocation8 + $0xfc] sm:$0xff]
    %v1308 = vld [vmem:[#allocation8 + $0x104] sm:$0xf]
    %v1309 = vld [vmem:[#allocation8 + $0x108] sm:$0xff]
    %v1310 = vld [vmem:[#allocation8 + $0x110] sm:$0xf]
    %v1311 = vld [vmem:[#allocation8 + $0x114] sm:$0xff]
    %v1312 = vld [vmem:[#allocation8 + $0x11c] sm:$0xf]
    %v1313 = vld [vmem:[#allocation8 + $0x120] sm:$0xff]
    %v1314 = vld [vmem:[#allocation8 + $0x128] sm:$0xf]
    %v1315 = vld [vmem:[#allocation8 + $0x12c] sm:$0xff]
    %v1316 = vld [vmem:[#allocation8 + $0x134] sm:$0xf]
    %v1317 = vld [vmem:[#allocation8 + $0x138] sm:$0xff]
    %v1318 = vld [vmem:[#allocation8 + $0x140] sm:$0xf]
    %v1319 = vld [vmem:[#allocation8 + $0x144] sm:$0xff]
    %v1320 = vld [vmem:[#allocation8 + $0x14c] sm:$0xf]
    %v1321 = vld [vmem:[#allocation8 + $0x150] sm:$0xff]
    %v1322 = vld [vmem:[#allocation8 + $0x158] sm:$0xf]
    %v1323 = vld [vmem:[#allocation8 + $0x15c] sm:$0xff]
    %v1324 = vld [vmem:[#allocation8 + $0x164] sm:$0xf]
    %v1325 = vld [vmem:[#allocation8 + $0x168] sm:$0xff]
    %v1326 = vld [vmem:[#allocation8 + $0x170] sm:$0xf]
    %v1327 = vld [vmem:[#allocation8 + $0x174] sm:$0xff]
    %v1328 = vld [vmem:[#allocation8 + $0x17c] sm:$0xf]
    %v1329 = vld [vmem:[#allocation8 + $0x180] sm:$0xff]
    %v1330 = vld [vmem:[#allocation8 + $0x188] sm:$0xf]
    %v1331 = vld [vmem:[#allocation8 + $0x18c] sm:$0xff]
    %v1332 = vld [vmem:[#allocation8 + $0x194] sm:$0xf]
    %v1333 = vld [vmem:[#allocation8 + $0x198] sm:$0xff]
    %v1334 = vld [vmem:[#allocation8 + $0x1a0] sm:$0xf]
    %v1335 = vld [vmem:[#allocation8 + $0x1a4] sm:$0xff]
    %v1336 = vld [vmem:[#allocation8 + $0x1ac] sm:$0xf]
    %v1337 = vld [vmem:[#allocation8 + $0x1b0] sm:$0xff]
    %v1338 = vld [vmem:[#allocation8 + $0x1b8] sm:$0xf]
    %v1339 = vld [vmem:[#allocation8 + $0x1bc] sm:$0xff]
    %v1340 = vld [vmem:[#allocation8 + $0x1c4] sm:$0xf]
    %v1341 = vld [vmem:[#allocation8 + $0x1c8] sm:$0xff]
    %v1342 = vld [vmem:[#allocation8 + $0x1d0] sm:$0xf]
    %v1343 = vld [vmem:[#allocation8 + $0x1d4] sm:$0xff]
    %v1344 = vld [vmem:[#allocation8 + $0x1dc] sm:$0xf]
    %v1345 = vld [vmem:[#allocation8 + $0x1e0] sm:$0xff]
    %v1346 = vld [vmem:[#allocation8 + $0x1e8] sm:$0xf]
    %v1347 = vld [vmem:[#allocation8 + $0x1ec] sm:$0xff]
    %v1348 = vld [vmem:[#allocation8 + $0x1f4] sm:$0xf]
    %v1349 = vld [vmem:[#allocation8 + $0x1f8] sm:$0xff]
    %v1350 = vld [vmem:[#allocation8 + $0x200] sm:$0xf]
    %v1351 = vld [vmem:[#allocation8 + $0x204] sm:$0xff]
    %v1352 = vld [vmem:[#allocation8 + $0x20c] sm:$0xf]
    %v1353 = vld [vmem:[#allocation8 + $0x210] sm:$0xff]
    %v1354 = vld [vmem:[#allocation8 + $0x218] sm:$0xf]
    %v1355 = vld [vmem:[#allocation8 + $0x21c] sm:$0xff]
    %v1356 = vld [vmem:[#allocation8 + $0x224] sm:$0xf]
    %v1357 = vld [vmem:[#allocation8 + $0x228] sm:$0xff]
    %v1358 = vld [vmem:[#allocation8 + $0x230] sm:$0xf]
    %v1359 = vld [vmem:[#allocation8 + $0x234] sm:$0xff]
    %v1360 = vld [vmem:[#allocation8 + $0x23c] sm:$0xf]
    %v1361 = vld [vmem:[#allocation8 + $0x240] sm:$0xff]
    %v1362 = vld [vmem:[#allocation8 + $0x248] sm:$0xf]
    %v1363 = vld [vmem:[#allocation8 + $0x24c] sm:$0xff]
    %v1364 = vld [vmem:[#allocation8 + $0x254] sm:$0xf]
    %v1365 = vld [vmem:[#allocation8 + $0x258] sm:$0xff]
    %v1366 = vld [vmem:[#allocation8 + $0x260] sm:$0xf]
    %v1367 = vld [vmem:[#allocation8 + $0x264] sm:$0xff]
    %v1368 = vld [vmem:[#allocation8 + $0x26c] sm:$0xf]
    %v1369 = vld [vmem:[#allocation8 + $0x270] sm:$0xff]
    %v1370 = vld [vmem:[#allocation8 + $0x278] sm:$0xf]
    %v1371 = vld [vmem:[#allocation8 + $0x27c] sm:$0xff]
    %v1372 = vld [vmem:[#allocation8 + $0x284] sm:$0xf]
    %v1373 = vld [vmem:[#allocation8 + $0x288] sm:$0xff]
    %v1374 = vld [vmem:[#allocation8 + $0x290] sm:$0xf]
    %v1375 = vld [vmem:[#allocation8 + $0x294] sm:$0xff]
    %v1376 = vld [vmem:[#allocation8 + $0x29c] sm:$0xf]
    %v1377 = vld [vmem:[#allocation8 + $0x2a0] sm:$0xff]
    %v1378 = vld [vmem:[#allocation8 + $0x2a8] sm:$0xf]
    %v1379 = vld [vmem:[#allocation8 + $0x2ac] sm:$0xff]
    %v1380 = vld [vmem:[#allocation8 + $0x2b4] sm:$0xf]
    %v1381 = vld [vmem:[#allocation8 + $0x2b8] sm:$0xff]
    %v1382 = vld [vmem:[#allocation8 + $0x2c0] sm:$0xf]
    %v1383 = vld [vmem:[#allocation8 + $0x2c4] sm:$0xff]
    %v1384 = vld [vmem:[#allocation8 + $0x2cc] sm:$0xf]
    %v1385 = vld [vmem:[#allocation8 + $0x2d0] sm:$0xff]
    %v1386 = vld [vmem:[#allocation8 + $0x2d8] sm:$0xf]
    %v1387 = vld [vmem:[#allocation8 + $0x2dc] sm:$0xff]
    %v1388 = vld [vmem:[#allocation8 + $0x2e4] sm:$0xf]
    %v1389 = vld [vmem:[#allocation8 + $0x2e8] sm:$0xff]
    %v1390 = vld [vmem:[#allocation8 + $0x2f0] sm:$0xf]
    %v1391 = vld [vmem:[#allocation8 + $0x2f4] sm:$0xff]
    %v1392 = vld [vmem:[#allocation8 + $0x2fc] sm:$0xf]
    %s1393 = scalar_lea.vmem [#allocation14], 2
    %v1394 = vld [vmem:[%s1393] ss:$8 sm:$0x7]
    %v1396 = vlaneseq
    %v1397 = vshrl.u32 %v1396, 7
    %v1398 = vsub.s32 0, %v1397
    %v1399 = vrot.slane %v1394, %v1398
    %v1400 = vlaneseq
    %v1401 = vshrl.u32 %v1400, 7
    %v1402 = vsub.s32 1, %v1401
    %v1403 = vrot.slane %v1394, %v1402
    %v1404 = vlaneseq
    %v1405 = vshrl.u32 %v1404, 7
    %v1406 = vsub.s32 2, %v1405
    %v1407 = vrot.slane %v1394, %v1406
    %v1539 = vunpack.c.l.b16 %v1265
    %v1540 = vunpack.c.h.b16 %v1265
    %v1541 = vunpack.c.l.b16 %v1266
    %v1542 = vunpack.c.l.b16 %v1267
    %v1543 = vunpack.c.h.b16 %v1267
    %v1544 = vunpack.c.l.b16 %v1268
    %v1545 = vunpack.c.l.b16 %v1269
    %v1546 = vunpack.c.h.b16 %v1269
    %v1547 = vunpack.c.l.b16 %v1270
    %v1548 = vunpack.c.l.b16 %v1271
    %v1549 = vunpack.c.h.b16 %v1271
    %v1550 = vunpack.c.l.b16 %v1272
    %v1551 = vunpack.c.l.b16 %v1273
    %v1552 = vunpack.c.h.b16 %v1273
    %v1553 = vunpack.c.l.b16 %v1274
    %v1554 = vunpack.c.l.b16 %v1275
    %v1555 = vunpack.c.h.b16 %v1275
    %v1556 = vunpack.c.l.b16 %v1276
    %v1557 = vunpack.c.l.b16 %v1277
    %v1558 = vunpack.c.h.b16 %v1277
    %v1559 = vunpack.c.l.b16 %v1278
    %v1560 = vunpack.c.l.b16 %v1279
    %v1561 = vunpack.c.h.b16 %v1279
    %v1562 = vunpack.c.l.b16 %v1280
    %v1563 = vunpack.c.l.b16 %v1281
    %v1564 = vunpack.c.h.b16 %v1281
    %v1565 = vunpack.c.l.b16 %v1282
    %v1566 = vunpack.c.l.b16 %v1283
    %v1567 = vunpack.c.h.b16 %v1283
    %v1568 = vunpack.c.l.b16 %v1284
    %v1569 = vunpack.c.l.b16 %v1285
    %v1570 = vunpack.c.h.b16 %v1285
    %v1571 = vunpack.c.l.b16 %v1286
    %v1572 = vunpack.c.l.b16 %v1287
    %v1573 = vunpack.c.h.b16 %v1287
    %v1574 = vunpack.c.l.b16 %v1288
    %v1575 = vunpack.c.l.b16 %v1289
    %v1576 = vunpack.c.h.b16 %v1289
    %v1577 = vunpack.c.l.b16 %v1290
    %v1578 = vunpack.c.l.b16 %v1291
    %v1579 = vunpack.c.h.b16 %v1291
    %v1580 = vunpack.c.l.b16 %v1292
    %v1581 = vunpack.c.l.b16 %v1293
    %v1582 = vunpack.c.h.b16 %v1293
    %v1583 = vunpack.c.l.b16 %v1294
    %v1584 = vunpack.c.l.b16 %v1295
    %v1585 = vunpack.c.h.b16 %v1295
    %v1586 = vunpack.c.l.b16 %v1296
    %v1587 = vunpack.c.l.b16 %v1297
    %v1588 = vunpack.c.h.b16 %v1297
    %v1589 = vunpack.c.l.b16 %v1298
    %v1590 = vunpack.c.l.b16 %v1299
    %v1591 = vunpack.c.h.b16 %v1299
    %v1592 = vunpack.c.l.b16 %v1300
    %v1593 = vunpack.c.l.b16 %v1301
    %v1594 = vunpack.c.h.b16 %v1301
    %v1595 = vunpack.c.l.b16 %v1302
    %v1596 = vunpack.c.l.b16 %v1303
    %v1597 = vunpack.c.h.b16 %v1303
    %v1598 = vunpack.c.l.b16 %v1304
    %v1599 = vunpack.c.l.b16 %v1305
    %v1600 = vunpack.c.h.b16 %v1305
    %v1601 = vunpack.c.l.b16 %v1306
    %v1602 = vunpack.c.l.b16 %v1307
    %v1603 = vunpack.c.h.b16 %v1307
    %v1604 = vunpack.c.l.b16 %v1308
    %v1605 = vunpack.c.l.b16 %v1309
    %v1606 = vunpack.c.h.b16 %v1309
    %v1607 = vunpack.c.l.b16 %v1310
    %v1608 = vunpack.c.l.b16 %v1311
    %v1609 = vunpack.c.h.b16 %v1311
    %v1610 = vunpack.c.l.b16 %v1312
    %v1611 = vunpack.c.l.b16 %v1313
    %v1612 = vunpack.c.h.b16 %v1313
    %v1613 = vunpack.c.l.b16 %v1314
    %v1614 = vunpack.c.l.b16 %v1315
    %v1615 = vunpack.c.h.b16 %v1315
    %v1616 = vunpack.c.l.b16 %v1316
    %v1617 = vunpack.c.l.b16 %v1317
    %v1618 = vunpack.c.h.b16 %v1317
    %v1619 = vunpack.c.l.b16 %v1318
    %v1620 = vunpack.c.l.b16 %v1319
    %v1621 = vunpack.c.h.b16 %v1319
    %v1622 = vunpack.c.l.b16 %v1320
    %v1623 = vunpack.c.l.b16 %v1321
    %v1624 = vunpack.c.h.b16 %v1321
    %v1625 = vunpack.c.l.b16 %v1322
    %v1626 = vunpack.c.l.b16 %v1323
    %v1627 = vunpack.c.h.b16 %v1323
    %v1628 = vunpack.c.l.b16 %v1324
    %v1629 = vunpack.c.l.b16 %v1325
    %v1630 = vunpack.c.h.b16 %v1325
    %v1631 = vunpack.c.l.b16 %v1326
    %v1632 = vunpack.c.l.b16 %v1327
    %v1633 = vunpack.c.h.b16 %v1327
    %v1634 = vunpack.c.l.b16 %v1328
    %v1635 = vunpack.c.l.b16 %v1329
    %v1636 = vunpack.c.h.b16 %v1329
    %v1637 = vunpack.c.l.b16 %v1330
    %v1638 = vunpack.c.l.b16 %v1331
    %v1639 = vunpack.c.h.b16 %v1331
    %v1640 = vunpack.c.l.b16 %v1332
    %v1641 = vunpack.c.l.b16 %v1333
    %v1642 = vunpack.c.h.b16 %v1333
    %v1643 = vunpack.c.l.b16 %v1334
    %v1644 = vunpack.c.l.b16 %v1335
    %v1645 = vunpack.c.h.b16 %v1335
    %v1646 = vunpack.c.l.b16 %v1336
    %v1647 = vunpack.c.l.b16 %v1337
    %v1648 = vunpack.c.h.b16 %v1337
    %v1649 = vunpack.c.l.b16 %v1338
    %v1650 = vunpack.c.l.b16 %v1339
    %v1651 = vunpack.c.h.b16 %v1339
    %v1652 = vunpack.c.l.b16 %v1340
    %v1653 = vunpack.c.l.b16 %v1341
    %v1654 = vunpack.c.h.b16 %v1341
    %v1655 = vunpack.c.l.b16 %v1342
    %v1656 = vunpack.c.l.b16 %v1343
    %v1657 = vunpack.c.h.b16 %v1343
    %v1658 = vunpack.c.l.b16 %v1344
    %v1659 = vunpack.c.l.b16 %v1345
    %v1660 = vunpack.c.h.b16 %v1345
    %v1661 = vunpack.c.l.b16 %v1346
    %v1662 = vunpack.c.l.b16 %v1347
    %v1663 = vunpack.c.h.b16 %v1347
    %v1664 = vunpack.c.l.b16 %v1348
    %v1665 = vunpack.c.l.b16 %v1349
    %v1666 = vunpack.c.h.b16 %v1349
    %v1667 = vunpack.c.l.b16 %v1350
    %v1668 = vunpack.c.l.b16 %v1351
    %v1669 = vunpack.c.h.b16 %v1351
    %v1670 = vunpack.c.l.b16 %v1352
    %v1671 = vunpack.c.l.b16 %v1353
    %v1672 = vunpack.c.h.b16 %v1353
    %v1673 = vunpack.c.l.b16 %v1354
    %v1674 = vunpack.c.l.b16 %v1355
    %v1675 = vunpack.c.h.b16 %v1355
    %v1676 = vunpack.c.l.b16 %v1356
    %v1677 = vunpack.c.l.b16 %v1357
    %v1678 = vunpack.c.h.b16 %v1357
    %v1679 = vunpack.c.l.b16 %v1358
    %v1680 = vunpack.c.l.b16 %v1359
    %v1681 = vunpack.c.h.b16 %v1359
    %v1682 = vunpack.c.l.b16 %v1360
    %v1683 = vunpack.c.l.b16 %v1361
    %v1684 = vunpack.c.h.b16 %v1361
    %v1685 = vunpack.c.l.b16 %v1362
    %v1686 = vunpack.c.l.b16 %v1363
    %v1687 = vunpack.c.h.b16 %v1363
    %v1688 = vunpack.c.l.b16 %v1364
    %v1689 = vunpack.c.l.b16 %v1365
    %v1690 = vunpack.c.h.b16 %v1365
    %v1691 = vunpack.c.l.b16 %v1366
    %v1692 = vunpack.c.l.b16 %v1367
    %v1693 = vunpack.c.h.b16 %v1367
    %v1694 = vunpack.c.l.b16 %v1368
    %v1695 = vunpack.c.l.b16 %v1369
    %v1696 = vunpack.c.h.b16 %v1369
    %v1697 = vunpack.c.l.b16 %v1370
    %v1698 = vunpack.c.l.b16 %v1371
    %v1699 = vunpack.c.h.b16 %v1371
    %v1700 = vunpack.c.l.b16 %v1372
    %v1701 = vunpack.c.l.b16 %v1373
    %v1702 = vunpack.c.h.b16 %v1373
    %v1703 = vunpack.c.l.b16 %v1374
    %v1704 = vunpack.c.l.b16 %v1375
    %v1705 = vunpack.c.h.b16 %v1375
    %v1706 = vunpack.c.l.b16 %v1376
    %v1707 = vunpack.c.l.b16 %v1377
    %v1708 = vunpack.c.h.b16 %v1377
    %v1709 = vunpack.c.l.b16 %v1378
    %v1710 = vunpack.c.l.b16 %v1379
    %v1711 = vunpack.c.h.b16 %v1379
    %v1712 = vunpack.c.l.b16 %v1380
    %v1713 = vunpack.c.l.b16 %v1381
    %v1714 = vunpack.c.h.b16 %v1381
    %v1715 = vunpack.c.l.b16 %v1382
    %v1716 = vunpack.c.l.b16 %v1383
    %v1717 = vunpack.c.h.b16 %v1383
    %v1718 = vunpack.c.l.b16 %v1384
    %v1719 = vunpack.c.l.b16 %v1385
    %v1720 = vunpack.c.h.b16 %v1385
    %v1721 = vunpack.c.l.b16 %v1386
    %v1722 = vunpack.c.l.b16 %v1387
    %v1723 = vunpack.c.h.b16 %v1387
    %v1724 = vunpack.c.l.b16 %v1388
    %v1725 = vunpack.c.l.b16 %v1389
    %v1726 = vunpack.c.h.b16 %v1389
    %v1727 = vunpack.c.l.b16 %v1390
    %v1728 = vunpack.c.l.b16 %v1391
    %v1729 = vunpack.c.h.b16 %v1391
    %v1730 = vunpack.c.l.b16 %v1392
    %v1731 = vpack.c.b16 %v1542, %v1539
    %v1732 = vpack.c.b16 %v1543, %v1540
    %v1733 = vpack.c.b16 %v1544, %v1541
    %v1734 = vpack.c.b16 %v1548, %v1545
    %v1735 = vpack.c.b16 %v1549, %v1546
    %v1736 = vpack.c.b16 %v1550, %v1547
    %v1737 = vpack.c.b16 %v1554, %v1551
    %v1738 = vpack.c.b16 %v1555, %v1552
    %v1739 = vpack.c.b16 %v1556, %v1553
    %v1740 = vpack.c.b16 %v1560, %v1557
    %v1741 = vpack.c.b16 %v1561, %v1558
    %v1742 = vpack.c.b16 %v1562, %v1559
    %v1743 = vpack.c.b16 %v1566, %v1563
    %v1744 = vpack.c.b16 %v1567, %v1564
    %v1745 = vpack.c.b16 %v1568, %v1565
    %v1746 = vpack.c.b16 %v1572, %v1569
    %v1747 = vpack.c.b16 %v1573, %v1570
    %v1748 = vpack.c.b16 %v1574, %v1571
    %v1749 = vpack.c.b16 %v1578, %v1575
    %v1750 = vpack.c.b16 %v1579, %v1576
    %v1751 = vpack.c.b16 %v1580, %v1577
    %v1752 = vpack.c.b16 %v1584, %v1581
    %v1753 = vpack.c.b16 %v1585, %v1582
    %v1754 = vpack.c.b16 %v1586, %v1583
    %v1755 = vpack.c.b16 %v1590, %v1587
    %v1756 = vpack.c.b16 %v1591, %v1588
    %v1757 = vpack.c.b16 %v1592, %v1589
    %v1758 = vpack.c.b16 %v1596, %v1593
    %v1759 = vpack.c.b16 %v1597, %v1594
    %v1760 = vpack.c.b16 %v1598, %v1595
    %v1761 = vpack.c.b16 %v1602, %v1599
    %v1762 = vpack.c.b16 %v1603, %v1600
    %v1763 = vpack.c.b16 %v1604, %v1601
    %v1764 = vpack.c.b16 %v1608, %v1605
    %v1765 = vpack.c.b16 %v1609, %v1606
    %v1766 = vpack.c.b16 %v1610, %v1607
    %v1767 = vpack.c.b16 %v1614, %v1611
    %v1768 = vpack.c.b16 %v1615, %v1612
    %v1769 = vpack.c.b16 %v1616, %v1613
    %v1770 = vpack.c.b16 %v1620, %v1617
    %v1771 = vpack.c.b16 %v1621, %v1618
    %v1772 = vpack.c.b16 %v1622, %v1619
    %v1773 = vpack.c.b16 %v1626, %v1623
    %v1774 = vpack.c.b16 %v1627, %v1624
    %v1775 = vpack.c.b16 %v1628, %v1625
    %v1776 = vpack.c.b16 %v1632, %v1629
    %v1777 = vpack.c.b16 %v1633, %v1630
    %v1778 = vpack.c.b16 %v1634, %v1631
    %v1779 = vpack.c.b16 %v1638, %v1635
    %v1780 = vpack.c.b16 %v1639, %v1636
    %v1781 = vpack.c.b16 %v1640, %v1637
    %v1782 = vpack.c.b16 %v1644, %v1641
    %v1783 = vpack.c.b16 %v1645, %v1642
    %v1784 = vpack.c.b16 %v1646, %v1643
    %v1785 = vpack.c.b16 %v1650, %v1647
    %v1786 = vpack.c.b16 %v1651, %v1648
    %v1787 = vpack.c.b16 %v1652, %v1649
    %v1788 = vpack.c.b16 %v1656, %v1653
    %v1789 = vpack.c.b16 %v1657, %v1654
    %v1790 = vpack.c.b16 %v1658, %v1655
    %v1791 = vpack.c.b16 %v1662, %v1659
    %v1792 = vpack.c.b16 %v1663, %v1660
    %v1793 = vpack.c.b16 %v1664, %v1661
    %v1794 = vpack.c.b16 %v1668, %v1665
    %v1795 = vpack.c.b16 %v1669, %v1666
    %v1796 = vpack.c.b16 %v1670, %v1667
    %v1797 = vpack.c.b16 %v1674, %v1671
    %v1798 = vpack.c.b16 %v1675, %v1672
    %v1799 = vpack.c.b16 %v1676, %v1673
    %v1800 = vpack.c.b16 %v1680, %v1677
    %v1801 = vpack.c.b16 %v1681, %v1678
    %v1802 = vpack.c.b16 %v1682, %v1679
    %v1803 = vpack.c.b16 %v1686, %v1683
    %v1804 = vpack.c.b16 %v1687, %v1684
    %v1805 = vpack.c.b16 %v1688, %v1685
    %v1806 = vpack.c.b16 %v1692, %v1689
    %v1807 = vpack.c.b16 %v1693, %v1690
    %v1808 = vpack.c.b16 %v1694, %v1691
    %v1809 = vpack.c.b16 %v1698, %v1695
    %v1810 = vpack.c.b16 %v1699, %v1696
    %v1811 = vpack.c.b16 %v1700, %v1697
    %v1812 = vpack.c.b16 %v1704, %v1701
    %v1813 = vpack.c.b16 %v1705, %v1702
    %v1814 = vpack.c.b16 %v1706, %v1703
    %v1815 = vpack.c.b16 %v1710, %v1707
    %v1816 = vpack.c.b16 %v1711, %v1708
    %v1817 = vpack.c.b16 %v1712, %v1709
    %v1818 = vpack.c.b16 %v1716, %v1713
    %v1819 = vpack.c.b16 %v1717, %v1714
    %v1820 = vpack.c.b16 %v1718, %v1715
    %v1821 = vpack.c.b16 %v1722, %v1719
    %v1822 = vpack.c.b16 %v1723, %v1720
    %v1823 = vpack.c.b16 %v1724, %v1721
    %v1824 = vpack.c.b16 %v1728, %v1725
    %v1825 = vpack.c.b16 %v1729, %v1726
    %v1826 = vpack.c.b16 %v1730, %v1727
    %1923 = vmatprep.subr.bf16.mxu0 %v1732
    %1924 = vmatpush1.bf16.msra.mxu0 %v1731
    %1925 = vmatprep.subr.bf16.mxu0 %v1735
    %1926 = vmatpush1.bf16.msra.mxu0 %v1734
    %1927 = vmatprep.subr.bf16.mxu0 %v1738
    %1928 = vmatpush1.bf16.msra.mxu0 %v1737
    %1929 = vmatprep.subr.bf16.mxu0 %v1741
    %1930 = vmatpush1.bf16.msra.mxu0 %v1740
    %1931 = vmatprep.subr.bf16.mxu0 %v1744
    %1932 = vmatpush1.bf16.msra.mxu0 %v1743
    %1933 = vmatprep.subr.bf16.mxu0 %v1747
    %1934 = vmatpush1.bf16.msra.mxu0 %v1746
    %1935 = vmatprep.subr.bf16.mxu0 %v1750
    %1936 = vmatpush1.bf16.msra.mxu0 %v1749
    %1937 = vmatprep.subr.bf16.mxu0 %v1753
    %1938 = vmatpush1.bf16.msra.mxu0 %v1752
    %1939 = vmatprep.subr.bf16.mxu0 %v1756
    %1940 = vmatpush1.bf16.msra.mxu0 %v1755
    %1941 = vmatprep.subr.bf16.mxu0 %v1759
    %1942 = vmatpush1.bf16.msra.mxu0 %v1758
    %1943 = vmatprep.subr.bf16.mxu0 %v1762
    %1944 = vmatpush1.bf16.msra.mxu0 %v1761
    %1945 = vmatprep.subr.bf16.mxu0 %v1765
    %1946 = vmatpush1.bf16.msra.mxu0 %v1764
    %1947 = vmatprep.subr.bf16.mxu0 %v1768
    %1948 = vmatpush1.bf16.msra.mxu0 %v1767
    %1949 = vmatprep.subr.bf16.mxu0 %v1771
    %1950 = vmatpush1.bf16.msra.mxu0 %v1770
    %1951 = vmatprep.subr.bf16.mxu0 %v1774
    %1952 = vmatpush1.bf16.msra.mxu0 %v1773
    %1953 = vmatprep.subr.bf16.mxu0 %v1777
    %1954 = vmatpush1.bf16.msra.mxu0 %v1776
    %1955 = vmatprep.mubr.bf16.mxu0 %v1262
    %1956 = vmatmul.mubr.bf16.gmra.mrb[0].mxu0 %v1261
    %v1957 = vpop.f32.mrb[0].mxu0
    %v1958 = vadd.f32 %v1399, %v1957
    %v1959 = vpop.f32.mrb[0].mxu0
    %v1960 = vadd.f32 %v1403, %v1959
    %v1961 = vpop.f32.mrb[0].mxu0
    %v1962 = vpop.f32.mrb[0].mxu0
    %1963 = vdwg.mxu0
    %1964 = vmatprep.subr.bf16.mxu0 %v1780
    %1965 = vmatpush1.bf16.msra.mxu0 %v1779
    %1966 = vmatprep.subr.bf16.mxu0 %v1783
    %1967 = vmatpush1.bf16.msra.mxu0 %v1782
    %1968 = vmatprep.subr.bf16.mxu0 %v1786
    %1969 = vmatpush1.bf16.msra.mxu0 %v1785
    %1970 = vmatprep.subr.bf16.mxu0 %v1789
    %1971 = vmatpush1.bf16.msra.mxu0 %v1788
    %1972 = vmatprep.subr.bf16.mxu0 %v1792
    %1973 = vmatpush1.bf16.msra.mxu0 %v1791
    %1974 = vmatprep.subr.bf16.mxu0 %v1795
    %1975 = vmatpush1.bf16.msra.mxu0 %v1794
    %1976 = vmatprep.subr.bf16.mxu0 %v1798
    %1977 = vmatpush1.bf16.msra.mxu0 %v1797
    %1978 = vmatprep.subr.bf16.mxu0 %v1801
    %1979 = vmatpush1.bf16.msra.mxu0 %v1800
    %1980 = vmatprep.subr.bf16.mxu0 %v1804
    %1981 = vmatpush1.bf16.msra.mxu0 %v1803
    %1982 = vmatprep.subr.bf16.mxu0 %v1807
    %1983 = vmatpush1.bf16.msra.mxu0 %v1806
    %1984 = vmatprep.subr.bf16.mxu0 %v1810
    %1985 = vmatpush1.bf16.msra.mxu0 %v1809
    %1986 = vmatprep.subr.bf16.mxu0 %v1813
    %1987 = vmatpush1.bf16.msra.mxu0 %v1812
    %1988 = vmatprep.subr.bf16.mxu0 %v1816
    %1989 = vmatpush1.bf16.msra.mxu0 %v1815
    %1990 = vmatprep.subr.bf16.mxu0 %v1819
    %1991 = vmatpush1.bf16.msra.mxu0 %v1818
    %1992 = vmatprep.subr.bf16.mxu0 %v1822
    %1993 = vmatpush1.bf16.msra.mxu0 %v1821
    %1994 = vmatprep.subr.bf16.mxu0 %v1825
    %1995 = vmatpush1.bf16.msra.mxu0 %v1824
    %1996 = vmatprep.mubr.bf16.mxu0 %v1264
    %1997 = vmatmul.mubr.bf16.gmra.mrb[0].mxu0 %v1263
    %v1998 = vpop.f32.mrb[0].mxu0
    %v1999 = vadd.f32 %v1958, %v1998
    %v2000 = vpop.f32.mrb[0].mxu0
    %v2001 = vadd.f32 %v1960, %v2000
    %v2002 = vpop.f32.mrb[0].mxu0
    %v2003 = vpop.f32.mrb[0].mxu0
    %2004 = vdwg.mxu0
    %2005 = vmatprep.subr.bf16.mxu0 0
    %2006 = vmatpush1.bf16.msra.mxu0 %v1733
    %2007 = vmatprep.subr.bf16.mxu0 0
    %2008 = vmatpush1.bf16.msra.mxu0 %v1736
    %2009 = vmatprep.subr.bf16.mxu0 0
    %2010 = vmatpush1.bf16.msra.mxu0 %v1739
    %2011 = vmatprep.subr.bf16.mxu0 0
    %2012 = vmatpush1.bf16.msra.mxu0 %v1742
    %2013 = vmatprep.subr.bf16.mxu0 0
    %2014 = vmatpush1.bf16.msra.mxu0 %v1745
    %2015 = vmatprep.subr.bf16.mxu0 0
    %2016 = vmatpush1.bf16.msra.mxu0 %v1748
    %2017 = vmatprep.subr.bf16.mxu0 0
    %2018 = vmatpush1.bf16.msra.mxu0 %v1751
    %2019 = vmatprep.subr.bf16.mxu0 0
    %2020 = vmatpush1.bf16.msra.mxu0 %v1754
    %2021 = vmatprep.subr.bf16.mxu0 0
    %2022 = vmatpush1.bf16.msra.mxu0 %v1757
    %2023 = vmatprep.subr.bf16.mxu0 0
    %2024 = vmatpush1.bf16.msra.mxu0 %v1760
    %2025 = vmatprep.subr.bf16.mxu0 0
    %2026 = vmatpush1.bf16.msra.mxu0 %v1763
    %2027 = vmatprep.subr.bf16.mxu0 0
    %2028 = vmatpush1.bf16.msra.mxu0 %v1766
    %2029 = vmatprep.subr.bf16.mxu0 0
    %2030 = vmatpush1.bf16.msra.mxu0 %v1769
    %2031 = vmatprep.subr.bf16.mxu0 0
    %2032 = vmatpush1.bf16.msra.mxu0 %v1772
    %2033 = vmatprep.subr.bf16.mxu0 0
    %2034 = vmatpush1.bf16.msra.mxu0 %v1775
    %2035 = vmatprep.subr.bf16.mxu0 0
    %2036 = vmatpush1.bf16.msra.mxu0 %v1778
    %2037 = vmatprep.mubr.bf16.mxu0 %v1262
    %2038 = vmatmul.mubr.bf16.gmra.mrb[0].mxu0 %v1261
    %v2039 = vpop.f32.mrb[0].mxu0
    %v2040 = vadd.f32 %v1407, %v2039
    %v2041 = vpop.f32.mrb[0].mxu0
    %v2042 = vpop.f32.mrb[0].mxu0
    %v2043 = vpop.f32.mrb[0].mxu0
    %2044 = vdwg.mxu0
    %2045 = vmatprep.subr.bf16.mxu0 0
    %2046 = vmatpush1.bf16.msra.mxu0 %v1781
    %2047 = vmatprep.subr.bf16.mxu0 0
    %2048 = vmatpush1.bf16.msra.mxu0 %v1784
    %2049 = vmatprep.subr.bf16.mxu0 0
    %2050 = vmatpush1.bf16.msra.mxu0 %v1787
    %2051 = vmatprep.subr.bf16.mxu0 0
    %2052 = vmatpush1.bf16.msra.mxu0 %v1790
    %2053 = vmatprep.subr.bf16.mxu0 0
    %2054 = vmatpush1.bf16.msra.mxu0 %v1793
    %2055 = vmatprep.subr.bf16.mxu0 0
    %2056 = vmatpush1.bf16.msra.mxu0 %v1796
    %2057 = vmatprep.subr.bf16.mxu0 0
    %2058 = vmatpush1.bf16.msra.mxu0 %v1799
    %2059 = vmatprep.subr.bf16.mxu0 0
    %2060 = vmatpush1.bf16.msra.mxu0 %v1802
    %2061 = vmatprep.subr.bf16.mxu0 0
    %2062 = vmatpush1.bf16.msra.mxu0 %v1805
    %2063 = vmatprep.subr.bf16.mxu0 0
    %2064 = vmatpush1.bf16.msra.mxu0 %v1808
    %2065 = vmatprep.subr.bf16.mxu0 0
    %2066 = vmatpush1.bf16.msra.mxu0 %v1811
    %2067 = vmatprep.subr.bf16.mxu0 0
    %2068 = vmatpush1.bf16.msra.mxu0 %v1814
    %2069 = vmatprep.subr.bf16.mxu0 0
    %2070 = vmatpush1.bf16.msra.mxu0 %v1817
    %2071 = vmatprep.subr.bf16.mxu0 0
    %2072 = vmatpush1.bf16.msra.mxu0 %v1820
    %2073 = vmatprep.subr.bf16.mxu0 0
    %2074 = vmatpush1.bf16.msra.mxu0 %v1823
    %2075 = vmatprep.subr.bf16.mxu0 0
    %2076 = vmatpush1.bf16.msra.mxu0 %v1826
    %2077 = vmatprep.mubr.bf16.mxu0 %v1264
    %2078 = vmatmul.mubr.bf16.gmra.mrb[0].mxu0 %v1263
    %v2079 = vpop.f32.mrb[0].mxu0
    %v2080 = vadd.f32 %v2040, %v2079
    %v2081 = vpop.f32.mrb[0].mxu0
    %v2082 = vpop.f32.mrb[0].mxu0
    %v2083 = vpop.f32.mrb[0].mxu0
    %2084 = vdwg.mxu0
    %v2085 = vmax.f32 %v1999, 0.0
    %v2086 = vmax.f32 %v2001, 0.0
    %v2087 = vmax.f32 %v2080, 0.0
    %v2088 = vpack.c.bf16 %v2085, %v2085
    %v2089 = vpack.c.bf16 %v2086, %v2086
    %v2090 = vpack.c.bf16 %v2087, %v2087
    %v2091 = vld [vmem:[#allocation10] sm:$0xff]
    %v2092 = vld [vmem:[#allocation10 + $0x8] sm:$0xff]
    %v2093 = vld [vmem:[#allocation10 + $0x10] sm:$0xff]
    %v2094 = vld [vmem:[#allocation10 + $0x18] sm:$0xff]
    %v2095 = vld [vmem:[#allocation10 + $0x20] sm:$0xff]
    %v2096 = vld [vmem:[#allocation10 + $0x28] sm:$0xff]
    %v2097 = vld [vmem:[#allocation10 + $0x30] sm:$0xff]
    %v2098 = vld [vmem:[#allocation10 + $0x38] sm:$0xff]
    %v2099 = vld [vmem:[#allocation10 + $0x40] sm:$0xff]
    %v2100 = vld [vmem:[#allocation10 + $0x48] sm:$0xff]
    %v2101 = vld [vmem:[#allocation10 + $0x50] sm:$0xff]
    %v2102 = vld [vmem:[#allocation10 + $0x58] sm:$0xff]
    %v2103 = vld [vmem:[#allocation10 + $0x60] sm:$0xff]
    %v2104 = vld [vmem:[#allocation10 + $0x68] sm:$0xff]
    %v2105 = vld [vmem:[#allocation10 + $0x70] sm:$0xff]
    %v2106 = vld [vmem:[#allocation10 + $0x78] sm:$0xff]
    %v2107 = vld [vmem:[#allocation10 + $0x80] sm:$0xff]
    %v2108 = vld [vmem:[#allocation10 + $0x88] sm:$0xff]
    %v2109 = vld [vmem:[#allocation10 + $0x90] sm:$0xff]
    %v2110 = vld [vmem:[#allocation10 + $0x98] sm:$0xff]
    %v2111 = vld [vmem:[#allocation10 + $0xa0] sm:$0xff]
    %v2112 = vld [vmem:[#allocation10 + $0xa8] sm:$0xff]
    %v2113 = vld [vmem:[#allocation10 + $0xb0] sm:$0xff]
    %v2114 = vld [vmem:[#allocation10 + $0xb8] sm:$0xff]
    %v2115 = vld [vmem:[#allocation10 + $0xc0] sm:$0xff]
    %v2116 = vld [vmem:[#allocation10 + $0xc8] sm:$0xff]
    %v2117 = vld [vmem:[#allocation10 + $0xd0] sm:$0xff]
    %v2118 = vld [vmem:[#allocation10 + $0xd8] sm:$0xff]
    %v2119 = vld [vmem:[#allocation10 + $0xe0] sm:$0xff]
    %v2120 = vld [vmem:[#allocation10 + $0xe8] sm:$0xff]
    %v2121 = vld [vmem:[#allocation10 + $0xf0] sm:$0xff]
    %v2122 = vld [vmem:[#allocation10 + $0xf8] sm:$0xff]
    %v2123 = vld [vmem:[#allocation10 + $0x100] sm:$0xff]
    %v2124 = vld [vmem:[#allocation10 + $0x108] sm:$0xff]
    %v2125 = vld [vmem:[#allocation10 + $0x110] sm:$0xff]
    %v2126 = vld [vmem:[#allocation10 + $0x118] sm:$0xff]
    %v2127 = vld [vmem:[#allocation10 + $0x120] sm:$0xff]
    %v2128 = vld [vmem:[#allocation10 + $0x128] sm:$0xff]
    %v2129 = vld [vmem:[#allocation10 + $0x130] sm:$0xff]
    %v2130 = vld [vmem:[#allocation10 + $0x138] sm:$0xff]
    %v2131 = vld [vmem:[#allocation10 + $0x140] sm:$0xff]
    %v2132 = vld [vmem:[#allocation10 + $0x148] sm:$0xff]
    %v2133 = vld [vmem:[#allocation10 + $0x150] sm:$0xff]
    %v2134 = vld [vmem:[#allocation10 + $0x158] sm:$0xff]
    %v2135 = vld [vmem:[#allocation10 + $0x160] sm:$0xff]
    %v2136 = vld [vmem:[#allocation10 + $0x168] sm:$0xff]
    %v2137 = vld [vmem:[#allocation10 + $0x170] sm:$0xff]
    %v2138 = vld [vmem:[#allocation10 + $0x178] sm:$0xff]
    %s2139 = scalar_lea.vmem [#allocation14], 3
    %v2140 = vld [vmem:[%s2139] ss:$8 sm:$0x3]
    %v2142 = vlaneseq
    %v2143 = vshrl.u32 %v2142, 7
    %v2144 = vsub.s32 0, %v2143
    %v2145 = vrot.slane %v2140, %v2144
    %v2146 = vlaneseq
    %v2147 = vshrl.u32 %v2146, 7
    %v2148 = vsub.s32 1, %v2147
    %v2149 = vrot.slane %v2140, %v2148
    %v2200 = vunpack.c.l.b16 %v2091
    %v2201 = vunpack.c.h.b16 %v2091
    %v2202 = vunpack.c.l.b16 %v2092
    %v2203 = vunpack.c.h.b16 %v2092
    %v2204 = vunpack.c.l.b16 %v2093
    %v2205 = vunpack.c.h.b16 %v2093
    %v2206 = vunpack.c.l.b16 %v2094
    %v2207 = vunpack.c.h.b16 %v2094
    %v2208 = vunpack.c.l.b16 %v2095
    %v2209 = vunpack.c.h.b16 %v2095
    %v2210 = vunpack.c.l.b16 %v2096
    %v2211 = vunpack.c.h.b16 %v2096
    %v2212 = vunpack.c.l.b16 %v2097
    %v2213 = vunpack.c.h.b16 %v2097
    %v2214 = vunpack.c.l.b16 %v2098
    %v2215 = vunpack.c.h.b16 %v2098
    %v2216 = vunpack.c.l.b16 %v2099
    %v2217 = vunpack.c.h.b16 %v2099
    %v2218 = vunpack.c.l.b16 %v2100
    %v2219 = vunpack.c.h.b16 %v2100
    %v2220 = vunpack.c.l.b16 %v2101
    %v2221 = vunpack.c.h.b16 %v2101
    %v2222 = vunpack.c.l.b16 %v2102
    %v2223 = vunpack.c.h.b16 %v2102
    %v2224 = vunpack.c.l.b16 %v2103
    %v2225 = vunpack.c.h.b16 %v2103
    %v2226 = vunpack.c.l.b16 %v2104
    %v2227 = vunpack.c.h.b16 %v2104
    %v2228 = vunpack.c.l.b16 %v2105
    %v2229 = vunpack.c.h.b16 %v2105
    %v2230 = vunpack.c.l.b16 %v2106
    %v2231 = vunpack.c.h.b16 %v2106
    %v2232 = vunpack.c.l.b16 %v2107
    %v2233 = vunpack.c.h.b16 %v2107
    %v2234 = vunpack.c.l.b16 %v2108
    %v2235 = vunpack.c.h.b16 %v2108
    %v2236 = vunpack.c.l.b16 %v2109
    %v2237 = vunpack.c.h.b16 %v2109
    %v2238 = vunpack.c.l.b16 %v2110
    %v2239 = vunpack.c.h.b16 %v2110
    %v2240 = vunpack.c.l.b16 %v2111
    %v2241 = vunpack.c.h.b16 %v2111
    %v2242 = vunpack.c.l.b16 %v2112
    %v2243 = vunpack.c.h.b16 %v2112
    %v2244 = vunpack.c.l.b16 %v2113
    %v2245 = vunpack.c.h.b16 %v2113
    %v2246 = vunpack.c.l.b16 %v2114
    %v2247 = vunpack.c.h.b16 %v2114
    %v2248 = vunpack.c.l.b16 %v2115
    %v2249 = vunpack.c.h.b16 %v2115
    %v2250 = vunpack.c.l.b16 %v2116
    %v2251 = vunpack.c.h.b16 %v2116
    %v2252 = vunpack.c.l.b16 %v2117
    %v2253 = vunpack.c.h.b16 %v2117
    %v2254 = vunpack.c.l.b16 %v2118
    %v2255 = vunpack.c.h.b16 %v2118
    %v2256 = vunpack.c.l.b16 %v2119
    %v2257 = vunpack.c.h.b16 %v2119
    %v2258 = vunpack.c.l.b16 %v2120
    %v2259 = vunpack.c.h.b16 %v2120
    %v2260 = vunpack.c.l.b16 %v2121
    %v2261 = vunpack.c.h.b16 %v2121
    %v2262 = vunpack.c.l.b16 %v2122
    %v2263 = vunpack.c.h.b16 %v2122
    %v2264 = vunpack.c.l.b16 %v2123
    %v2265 = vunpack.c.h.b16 %v2123
    %v2266 = vunpack.c.l.b16 %v2124
    %v2267 = vunpack.c.h.b16 %v2124
    %v2268 = vunpack.c.l.b16 %v2125
    %v2269 = vunpack.c.h.b16 %v2125
    %v2270 = vunpack.c.l.b16 %v2126
    %v2271 = vunpack.c.h.b16 %v2126
    %v2272 = vunpack.c.l.b16 %v2127
    %v2273 = vunpack.c.h.b16 %v2127
    %v2274 = vunpack.c.l.b16 %v2128
    %v2275 = vunpack.c.h.b16 %v2128
    %v2276 = vunpack.c.l.b16 %v2129
    %v2277 = vunpack.c.h.b16 %v2129
    %v2278 = vunpack.c.l.b16 %v2130
    %v2279 = vunpack.c.h.b16 %v2130
    %v2280 = vunpack.c.l.b16 %v2131
    %v2281 = vunpack.c.h.b16 %v2131
    %v2282 = vunpack.c.l.b16 %v2132
    %v2283 = vunpack.c.h.b16 %v2132
    %v2284 = vunpack.c.l.b16 %v2133
    %v2285 = vunpack.c.h.b16 %v2133
    %v2286 = vunpack.c.l.b16 %v2134
    %v2287 = vunpack.c.h.b16 %v2134
    %v2288 = vunpack.c.l.b16 %v2135
    %v2289 = vunpack.c.h.b16 %v2135
    %v2290 = vunpack.c.l.b16 %v2136
    %v2291 = vunpack.c.h.b16 %v2136
    %v2292 = vunpack.c.l.b16 %v2137
    %v2293 = vunpack.c.h.b16 %v2137
    %v2294 = vunpack.c.l.b16 %v2138
    %v2295 = vunpack.c.h.b16 %v2138
    %v2296 = vpack.c.b16 %v2202, %v2200
    %v2297 = vpack.c.b16 %v2203, %v2201
    %v2298 = vpack.c.b16 %v2206, %v2204
    %v2299 = vpack.c.b16 %v2207, %v2205
    %v2300 = vpack.c.b16 %v2210, %v2208
    %v2301 = vpack.c.b16 %v2211, %v2209
    %v2302 = vpack.c.b16 %v2214, %v2212
    %v2303 = vpack.c.b16 %v2215, %v2213
    %v2304 = vpack.c.b16 %v2218, %v2216
    %v2305 = vpack.c.b16 %v2219, %v2217
    %v2306 = vpack.c.b16 %v2222, %v2220
    %v2307 = vpack.c.b16 %v2223, %v2221
    %v2308 = vpack.c.b16 %v2226, %v2224
    %v2309 = vpack.c.b16 %v2227, %v2225
    %v2310 = vpack.c.b16 %v2230, %v2228
    %v2311 = vpack.c.b16 %v2231, %v2229
    %v2312 = vpack.c.b16 %v2234, %v2232
    %v2313 = vpack.c.b16 %v2235, %v2233
    %v2314 = vpack.c.b16 %v2238, %v2236
    %v2315 = vpack.c.b16 %v2239, %v2237
    %v2316 = vpack.c.b16 %v2242, %v2240
    %v2317 = vpack.c.b16 %v2243, %v2241
    %v2318 = vpack.c.b16 %v2246, %v2244
    %v2319 = vpack.c.b16 %v2247, %v2245
    %v2320 = vpack.c.b16 %v2250, %v2248
    %v2321 = vpack.c.b16 %v2251, %v2249
    %v2322 = vpack.c.b16 %v2254, %v2252
    %v2323 = vpack.c.b16 %v2255, %v2253
    %v2324 = vpack.c.b16 %v2258, %v2256
    %v2325 = vpack.c.b16 %v2259, %v2257
    %v2326 = vpack.c.b16 %v2262, %v2260
    %v2327 = vpack.c.b16 %v2263, %v2261
    %v2328 = vpack.c.b16 %v2266, %v2264
    %v2329 = vpack.c.b16 %v2267, %v2265
    %v2330 = vpack.c.b16 %v2270, %v2268
    %v2331 = vpack.c.b16 %v2271, %v2269
    %v2332 = vpack.c.b16 %v2274, %v2272
    %v2333 = vpack.c.b16 %v2275, %v2273
    %v2334 = vpack.c.b16 %v2278, %v2276
    %v2335 = vpack.c.b16 %v2279, %v2277
    %v2336 = vpack.c.b16 %v2282, %v2280
    %v2337 = vpack.c.b16 %v2283, %v2281
    %v2338 = vpack.c.b16 %v2286, %v2284
    %v2339 = vpack.c.b16 %v2287, %v2285
    %v2340 = vpack.c.b16 %v2290, %v2288
    %v2341 = vpack.c.b16 %v2291, %v2289
    %v2342 = vpack.c.b16 %v2294, %v2292
    %v2343 = vpack.c.b16 %v2295, %v2293
    %2392 = vmatprep.subr.bf16.mxu0 %v2297
    %2393 = vmatpush1.bf16.msra.mxu0 %v2296
    %2394 = vmatprep.subr.bf16.mxu0 %v2299
    %2395 = vmatpush1.bf16.msra.mxu0 %v2298
    %2396 = vmatprep.subr.bf16.mxu0 %v2301
    %2397 = vmatpush1.bf16.msra.mxu0 %v2300
    %2398 = vmatprep.subr.bf16.mxu0 %v2303
    %2399 = vmatpush1.bf16.msra.mxu0 %v2302
    %2400 = vmatprep.subr.bf16.mxu0 %v2305
    %2401 = vmatpush1.bf16.msra.mxu0 %v2304
    %2402 = vmatprep.subr.bf16.mxu0 %v2307
    %2403 = vmatpush1.bf16.msra.mxu0 %v2306
    %2404 = vmatprep.subr.bf16.mxu0 %v2309
    %2405 = vmatpush1.bf16.msra.mxu0 %v2308
    %2406 = vmatprep.subr.bf16.mxu0 %v2311
    %2407 = vmatpush1.bf16.msra.mxu0 %v2310
    %2408 = vmatprep.subr.bf16.mxu0 %v2313
    %2409 = vmatpush1.bf16.msra.mxu0 %v2312
    %2410 = vmatprep.subr.bf16.mxu0 %v2315
    %2411 = vmatpush1.bf16.msra.mxu0 %v2314
    %2412 = vmatprep.subr.bf16.mxu0 %v2317
    %2413 = vmatpush1.bf16.msra.mxu0 %v2316
    %2414 = vmatprep.subr.bf16.mxu0 %v2319
    %2415 = vmatpush1.bf16.msra.mxu0 %v2318
    %2416 = vmatprep.subr.bf16.mxu0 %v2321
    %2417 = vmatpush1.bf16.msra.mxu0 %v2320
    %2418 = vmatprep.subr.bf16.mxu0 %v2323
    %2419 = vmatpush1.bf16.msra.mxu0 %v2322
    %2420 = vmatprep.subr.bf16.mxu0 %v2325
    %2421 = vmatpush1.bf16.msra.mxu0 %v2324
    %2422 = vmatprep.subr.bf16.mxu0 %v2327
    %2423 = vmatpush1.bf16.msra.mxu0 %v2326
    %2424 = vmatprep.mubr.bf16.mxu0 %v2089
    %2425 = vmatmul.mubr.bf16.gmra.mrb[0].mxu0 %v2088
    %v2426 = vpop.f32.mrb[0].mxu0
    %v2427 = vadd.f32 %v2145, %v2426
    %v2428 = vpop.f32.mrb[0].mxu0
    %v2429 = vadd.f32 %v2149, %v2428
    %v2430 = vpop.f32.mrb[0].mxu0
    %v2431 = vpop.f32.mrb[0].mxu0
    %2432 = vdwg.mxu0
    %2433 = vmatprep.subr.bf16.mxu0 %v2329
    %2434 = vmatpush1.bf16.msra.mxu0 %v2328
    %2435 = vmatprep.subr.bf16.mxu0 %v2331
    %2436 = vmatpush1.bf16.msra.mxu0 %v2330
    %2437 = vmatprep.subr.bf16.mxu0 %v2333
    %2438 = vmatpush1.bf16.msra.mxu0 %v2332
    %2439 = vmatprep.subr.bf16.mxu0 %v2335
    %2440 = vmatpush1.bf16.msra.mxu0 %v2334
    %2441 = vmatprep.subr.bf16.mxu0 %v2337
    %2442 = vmatpush1.bf16.msra.mxu0 %v2336
    %2443 = vmatprep.subr.bf16.mxu0 %v2339
    %2444 = vmatpush1.bf16.msra.mxu0 %v2338
    %2445 = vmatprep.subr.bf16.mxu0 %v2341
    %2446 = vmatpush1.bf16.msra.mxu0 %v2340
    %2447 = vmatprep.subr.bf16.mxu0 %v2343
    %2448 = vmatpush1.bf16.msra.mxu0 %v2342
    %2449 = vmatprep.subr.bf16.mxu0 0
    %2450 = vmatpush1.bf16.msra.mxu0 0
    %2451 = vmatprep.subr.bf16.mxu0 0
    %2452 = vmatpush1.bf16.msra.mxu0 0
    %2453 = vmatprep.subr.bf16.mxu0 0
    %2454 = vmatpush1.bf16.msra.mxu0 0
    %2455 = vmatprep.subr.bf16.mxu0 0
    %2456 = vmatpush1.bf16.msra.mxu0 0
    %2457 = vmatprep.subr.bf16.mxu0 0
    %2458 = vmatpush1.bf16.msra.mxu0 0
    %2459 = vmatprep.subr.bf16.mxu0 0
    %2460 = vmatpush1.bf16.msra.mxu0 0
    %2461 = vmatprep.subr.bf16.mxu0 0
    %2462 = vmatpush1.bf16.msra.mxu0 0
    %2463 = vmatprep.subr.bf16.mxu0 0
    %2464 = vmatpush1.bf16.msra.mxu0 0
    %2465 = vmatprep.mubr.bf16.mxu0 0
    %2466 = vmatmul.mubr.bf16.gmra.mrb[0].mxu0 %v2090
    %v2467 = vpop.f32.mrb[0].mxu0
    %v2468 = vadd.f32 %v2427, %v2467
    %v2469 = vpop.f32.mrb[0].mxu0
    %v2470 = vadd.f32 %v2429, %v2469
    %v2471 = vpop.f32.mrb[0].mxu0
    %v2472 = vpop.f32.mrb[0].mxu0
    %2473 = vdwg.mxu0
    %v2474 = vmax.f32 %v2468, 0.0
    %v2475 = vmax.f32 %v2470, 0.0
    %v2476 = vpack.c.bf16 %v2474, %v2474
    %v2477 = vpack.c.bf16 %v2475, %v2475
    %v2478 = vld [vmem:[#allocation11] sm:$0xf]
    %v2479 = vld [vmem:[#allocation11 + $0x4] sm:$0xf]
    %v2480 = vld [vmem:[#allocation11 + $0x8] sm:$0xf]
    %v2481 = vld [vmem:[#allocation11 + $0xc] sm:$0xf]
    %v2482 = vld [vmem:[#allocation11 + $0x10] sm:$0xf]
    %v2483 = vld [vmem:[#allocation11 + $0x14] sm:$0xf]
    %v2484 = vld [vmem:[#allocation11 + $0x18] sm:$0xf]
    %v2485 = vld [vmem:[#allocation11 + $0x1c] sm:$0xf]
    %v2486 = vld [vmem:[#allocation11 + $0x20] sm:$0xf]
    %v2487 = vld [vmem:[#allocation11 + $0x24] sm:$0xf]
    %v2488 = vld [vmem:[#allocation11 + $0x28] sm:$0xf]
    %v2489 = vld [vmem:[#allocation11 + $0x2c] sm:$0xf]
    %v2490 = vld [vmem:[#allocation11 + $0x30] sm:$0xf]
    %v2491 = vld [vmem:[#allocation11 + $0x34] sm:$0xf]
    %v2492 = vld [vmem:[#allocation11 + $0x38] sm:$0xf]
    %v2493 = vld [vmem:[#allocation11 + $0x3c] sm:$0xf]
    %v2494 = vld [vmem:[#allocation11 + $0x40] sm:$0xf]
    %v2495 = vld [vmem:[#allocation11 + $0x44] sm:$0xf]
    %v2496 = vld [vmem:[#allocation11 + $0x48] sm:$0xf]
    %v2497 = vld [vmem:[#allocation11 + $0x4c] sm:$0xf]
    %v2498 = vld [vmem:[#allocation11 + $0x50] sm:$0xf]
    %v2499 = vld [vmem:[#allocation11 + $0x54] sm:$0xf]
    %v2500 = vld [vmem:[#allocation11 + $0x58] sm:$0xf]
    %v2501 = vld [vmem:[#allocation11 + $0x5c] sm:$0xf]
    %v2502 = vld [vmem:[#allocation11 + $0x60] sm:$0xf]
    %v2503 = vld [vmem:[#allocation11 + $0x64] sm:$0xf]
    %v2504 = vld [vmem:[#allocation11 + $0x68] sm:$0xf]
    %v2505 = vld [vmem:[#allocation11 + $0x6c] sm:$0xf]
    %v2506 = vld [vmem:[#allocation11 + $0x70] sm:$0xf]
    %v2507 = vld [vmem:[#allocation11 + $0x74] sm:$0xf]
    %v2508 = vld [vmem:[#allocation11 + $0x78] sm:$0xf]
    %v2509 = vld [vmem:[#allocation11 + $0x7c] sm:$0xf]
    %v2510 = vld [vmem:[#allocation14 + $0x4] ss:$0 sm:$0xff]
    %v2543 = vunpack.c.l.b16 %v2478
    %v2544 = vunpack.c.l.b16 %v2479
    %v2545 = vunpack.c.l.b16 %v2480
    %v2546 = vunpack.c.l.b16 %v2481
    %v2547 = vunpack.c.l.b16 %v2482
    %v2548 = vunpack.c.l.b16 %v2483
    %v2549 = vunpack.c.l.b16 %v2484
    %v2550 = vunpack.c.l.b16 %v2485
    %v2551 = vunpack.c.l.b16 %v2486
    %v2552 = vunpack.c.l.b16 %v2487
    %v2553 = vunpack.c.l.b16 %v2488
    %v2554 = vunpack.c.l.b16 %v2489
    %v2555 = vunpack.c.l.b16 %v2490
    %v2556 = vunpack.c.l.b16 %v2491
    %v2557 = vunpack.c.l.b16 %v2492
    %v2558 = vunpack.c.l.b16 %v2493
    %v2559 = vunpack.c.l.b16 %v2494
    %v2560 = vunpack.c.l.b16 %v2495
    %v2561 = vunpack.c.l.b16 %v2496
    %v2562 = vunpack.c.l.b16 %v2497
    %v2563 = vunpack.c.l.b16 %v2498
    %v2564 = vunpack.c.l.b16 %v2499
    %v2565 = vunpack.c.l.b16 %v2500
    %v2566 = vunpack.c.l.b16 %v2501
    %v2567 = vunpack.c.l.b16 %v2502
    %v2568 = vunpack.c.l.b16 %v2503
    %v2569 = vunpack.c.l.b16 %v2504
    %v2570 = vunpack.c.l.b16 %v2505
    %v2571 = vunpack.c.l.b16 %v2506
    %v2572 = vunpack.c.l.b16 %v2507
    %v2573 = vunpack.c.l.b16 %v2508
    %v2574 = vunpack.c.l.b16 %v2509
    %v2575 = vpack.c.b16 %v2544, %v2543
    %v2576 = vpack.c.b16 %v2546, %v2545
    %v2577 = vpack.c.b16 %v2548, %v2547
    %v2578 = vpack.c.b16 %v2550, %v2549
    %v2579 = vpack.c.b16 %v2552, %v2551
    %v2580 = vpack.c.b16 %v2554, %v2553
    %v2581 = vpack.c.b16 %v2556, %v2555
    %v2582 = vpack.c.b16 %v2558, %v2557
    %v2583 = vpack.c.b16 %v2560, %v2559
    %v2584 = vpack.c.b16 %v2562, %v2561
    %v2585 = vpack.c.b16 %v2564, %v2563
    %v2586 = vpack.c.b16 %v2566, %v2565
    %v2587 = vpack.c.b16 %v2568, %v2567
    %v2588 = vpack.c.b16 %v2570, %v2569
    %v2589 = vpack.c.b16 %v2572, %v2571
    %v2590 = vpack.c.b16 %v2574, %v2573
    %2607 = vmatprep.subr.bf16.mxu0 0
    %2608 = vmatpush1.bf16.msra.mxu0 %v2575
    %2609 = vmatprep.subr.bf16.mxu0 0
    %2610 = vmatpush1.bf16.msra.mxu0 %v2576
    %2611 = vmatprep.subr.bf16.mxu0 0
    %2612 = vmatpush1.bf16.msra.mxu0 %v2577
    %2613 = vmatprep.subr.bf16.mxu0 0
    %2614 = vmatpush1.bf16.msra.mxu0 %v2578
    %2615 = vmatprep.subr.bf16.mxu0 0
    %2616 = vmatpush1.bf16.msra.mxu0 %v2579
    %2617 = vmatprep.subr.bf16.mxu0 0
    %2618 = vmatpush1.bf16.msra.mxu0 %v2580
    %2619 = vmatprep.subr.bf16.mxu0 0
    %2620 = vmatpush1.bf16.msra.mxu0 %v2581
    %2621 = vmatprep.subr.bf16.mxu0 0
    %2622 = vmatpush1.bf16.msra.mxu0 %v2582
    %2623 = vmatprep.subr.bf16.mxu0 0
    %2624 = vmatpush1.bf16.msra.mxu0 %v2583
    %2625 = vmatprep.subr.bf16.mxu0 0
    %2626 = vmatpush1.bf16.msra.mxu0 %v2584
    %2627 = vmatprep.subr.bf16.mxu0 0
    %2628 = vmatpush1.bf16.msra.mxu0 %v2585
    %2629 = vmatprep.subr.bf16.mxu0 0
    %2630 = vmatpush1.bf16.msra.mxu0 %v2586
    %2631 = vmatprep.subr.bf16.mxu0 0
    %2632 = vmatpush1.bf16.msra.mxu0 %v2587
    %2633 = vmatprep.subr.bf16.mxu0 0
    %2634 = vmatpush1.bf16.msra.mxu0 %v2588
    %2635 = vmatprep.subr.bf16.mxu0 0
    %2636 = vmatpush1.bf16.msra.mxu0 %v2589
    %2637 = vmatprep.subr.bf16.mxu0 0
    %2638 = vmatpush1.bf16.msra.mxu0 %v2590
    %2639 = vmatprep.mubr.bf16.mxu0 %v2477
    %2640 = vmatmul.mubr.bf16.gmra.mrb[0].mxu0 %v2476
    %v2641 = vpop.f32.mrb[0].mxu0
    %v2642 = vadd.f32 %v2510, %v2641
    %v2643 = vpop.f32.mrb[0].mxu0
    %v2644 = vpop.f32.mrb[0].mxu0
    %v2645 = vpop.f32.mrb[0].mxu0
    %2646 = vdwg.mxu0
    %v2647 = vmax.f32 %v2642, 0.0
    %v2648 = vpack.c.bf16 %v2647, %v2647
    %v2649 = vld [vmem:[#allocation13] sm:$0xf]
    %v2650 = vld [vmem:[#allocation13 + $0x4] sm:$0xf]
    %v2651 = vld [vmem:[#allocation13 + $0x8] sm:$0xf]
    %v2652 = vld [vmem:[#allocation13 + $0xc] sm:$0xf]
    %v2653 = vld [vmem:[#allocation13 + $0x10] sm:$0xf]
    %v2654 = vld [vmem:[#allocation13 + $0x14] sm:$0xf]
    %v2655 = vld [vmem:[#allocation13 + $0x18] sm:$0xf]
    %v2656 = vld [vmem:[#allocation13 + $0x1c] sm:$0xf]
    %v2657 = vld [vmem:[#allocation13 + $0x20] sm:$0xf]
    %v2658 = vld [vmem:[#allocation13 + $0x24] sm:$0xf]
    %v2659 = vld [vmem:[#allocation13 + $0x28] sm:$0xf]
    %v2660 = vld [vmem:[#allocation13 + $0x2c] sm:$0xf]
    %v2661 = vld [vmem:[#allocation13 + $0x30] sm:$0xf]
    %v2662 = vld [vmem:[#allocation13 + $0x34] sm:$0xf]
    %v2663 = vld [vmem:[#allocation13 + $0x38] sm:$0xf]
    %v2664 = vld [vmem:[#allocation13 + $0x3c] sm:$0xf]
    %v2665 = vld [vmem:[#allocation14 + $0x5] ss:$0 sm:$0xff]
    %v2682 = vunpack.c.l.b16 %v2649
    %v2683 = vunpack.c.l.b16 %v2650
    %v2684 = vunpack.c.l.b16 %v2651
    %v2685 = vunpack.c.l.b16 %v2652
    %v2686 = vunpack.c.l.b16 %v2653
    %v2687 = vunpack.c.l.b16 %v2654
    %v2688 = vunpack.c.l.b16 %v2655
    %v2689 = vunpack.c.l.b16 %v2656
    %v2690 = vunpack.c.l.b16 %v2657
    %v2691 = vunpack.c.l.b16 %v2658
    %v2692 = vunpack.c.l.b16 %v2659
    %v2693 = vunpack.c.l.b16 %v2660
    %v2694 = vunpack.c.l.b16 %v2661
    %v2695 = vunpack.c.l.b16 %v2662
    %v2696 = vunpack.c.l.b16 %v2663
    %v2697 = vunpack.c.l.b16 %v2664
    %v2698 = vpack.c.b16 %v2683, %v2682
    %v2699 = vpack.c.b16 %v2685, %v2684
    %v2700 = vpack.c.b16 %v2687, %v2686
    %v2701 = vpack.c.b16 %v2689, %v2688
    %v2702 = vpack.c.b16 %v2691, %v2690
    %v2703 = vpack.c.b16 %v2693, %v2692
    %v2704 = vpack.c.b16 %v2695, %v2694
    %v2705 = vpack.c.b16 %v2697, %v2696
    %2714 = vmatprep.subr.bf16.mxu0 0
    %2715 = vmatpush1.bf16.msra.mxu0 %v2698
    %2716 = vmatprep.subr.bf16.mxu0 0
    %2717 = vmatpush1.bf16.msra.mxu0 %v2699
    %2718 = vmatprep.subr.bf16.mxu0 0
    %2719 = vmatpush1.bf16.msra.mxu0 %v2700
    %2720 = vmatprep.subr.bf16.mxu0 0
    %2721 = vmatpush1.bf16.msra.mxu0 %v2701
    %2722 = vmatprep.subr.bf16.mxu0 0
    %2723 = vmatpush1.bf16.msra.mxu0 %v2702
    %2724 = vmatprep.subr.bf16.mxu0 0
    %2725 = vmatpush1.bf16.msra.mxu0 %v2703
    %2726 = vmatprep.subr.bf16.mxu0 0
    %2727 = vmatpush1.bf16.msra.mxu0 %v2704
    %2728 = vmatprep.subr.bf16.mxu0 0
    %2729 = vmatpush1.bf16.msra.mxu0 %v2705
    %2730 = vmatprep.subr.bf16.mxu0 0
    %2731 = vmatpush1.bf16.msra.mxu0 0
    %2732 = vmatprep.subr.bf16.mxu0 0
    %2733 = vmatpush1.bf16.msra.mxu0 0
    %2734 = vmatprep.subr.bf16.mxu0 0
    %2735 = vmatpush1.bf16.msra.mxu0 0
    %2736 = vmatprep.subr.bf16.mxu0 0
    %2737 = vmatpush1.bf16.msra.mxu0 0
    %2738 = vmatprep.subr.bf16.mxu0 0
    %2739 = vmatpush1.bf16.msra.mxu0 0
    %2740 = vmatprep.subr.bf16.mxu0 0
    %2741 = vmatpush1.bf16.msra.mxu0 0
    %2742 = vmatprep.subr.bf16.mxu0 0
    %2743 = vmatpush1.bf16.msra.mxu0 0
    %2744 = vmatprep.subr.bf16.mxu0 0
    %2745 = vmatpush1.bf16.msra.mxu0 0
    %2746 = vmatprep.mubr.bf16.mxu0 0
    %2747 = vmatmul.mubr.bf16.gmra.mrb[0].mxu0 %v2648
    %v2748 = vpop.f32.mrb[0].mxu0
    %v2749 = vadd.f32 %v2665, %v2748
    %v2750 = vpop.f32.mrb[0].mxu0
    %v2751 = vpop.f32.mrb[0].mxu0
    %v2752 = vpop.f32.mrb[0].mxu0
    %2753 = vdwg.mxu0
    %2754 = vst [vmem:[#allocation16] sm:$0xff] %v2749
    // Predicated region
    $region66: #{tpu_custom_call.1} parent=1 // pred_check
      _
    $region67: #{tpu_custom_call.1} parent=1 // pred_check_branch
      %2756 = sbr.rel (0) target = $region69
    $region68: #{tpu_custom_call.1} parent=1 // pred_region
      %s2758 = ssub.s32 128, 128
      %2759 = vsyncadd [#allocation4], %s2758
      %s2761 = sshll.u32 [#allocation16], 4
      %s2762 = int_to_ptr.vmem [resolvable:$true] %s2761
      %2764 = dma.vmem_to_hbm [thread:$0]  %s2762, 128, %s8, [#allocation4]
    $region69: #{tpu_custom_call.1} parent=1 // pred_fallthru
      _
    // Predicated region
    $region70: #{tpu_custom_call.1} parent=1 // pred_check
      _
    $region71: #{tpu_custom_call.1} parent=1 // pred_check_branch
      %2766 = sbr.rel (0) target = $region73
    $region72: #{tpu_custom_call.1} parent=1 // pred_region
      %2767 = dma.done [#allocation4], 128
    $region73: #{tpu_custom_call.1} parent=1 // pred_fallthru
      _
    %2768 = vsyncpa [#allocation3], 1
    %2769 = vsyncpa [#allocation6], 1
    %2770 = vsyncpa [#allocation9], 1
    %2771 = vsyncpa [#allocation12], 1
    %2772 = vsyncpa [#allocation15], 1
    %2773 = vsyncpa [#allocation4], 1

</llo_original>
